<compile_context>
chip_gen: v6e
topology: v6e:2x2x1
jax: 0.10.0
libtpu: 0.0.40
codegen_flags: <defaults>
</compile_context>

<pallas_src>
import jax
import jax.numpy as jnp
import numpy as np
from jax import lax
from jax.experimental import pallas as pl
from jax.experimental.pallas import tpu as pltpu


# ---------------------------------------------------------------------------
# Pallas kernel
# ---------------------------------------------------------------------------

def dwsep_kernel(xp_ref, wd_ref, wp_ref, scale_ref, shift_ref, o_ref):
    """Fused depthwise(3x3, pad=1) + pointwise(1x1) + BN(eval) + ReLU6.

    One grid step == one batch element, whole padded image resident in VMEM.
      xp_ref    : (H+2, W+2, Cin)  f32  padded NHWC input
      wd_ref    : (9, Cin)         f32  depthwise taps, row k <-> (kh, kw) = divmod(k, 3)
      wp_ref    : (Cin, Cout)      bf16 pointwise weights
      scale_ref : (1, Cout)        f32  folded BN scale = gamma / sqrt(var + eps)
      shift_ref : (1, Cout)        f32  folded BN shift = beta - mean * scale
      o_ref     : (H, W, Cout)     f32
    """
    h, w, cout = o_ref.shape
    cin = xp_ref.shape[-1]

    wd = wd_ref[...]                       # (9, Cin)

    # Depthwise 3x3: nine statically shifted windows, per-channel f32 FMAs
    # on the VPU (depthwise conv is inherently elementwise per channel).
    acc = xp_ref[0:h, 0:w, :] * wd[0:1].reshape(1, 1, cin)
    for k in range(1, 9):
        kh, kw = divmod(k, 3)
        acc = acc + xp_ref[kh:kh + h, kw:kw + w, :] * wd[k:k + 1].reshape(1, 1, cin)

    # Pointwise 1x1 conv on the MXU: (H*W, Cin) @ (Cin, Cout).
    # bf16 operands (perf review), f32 accumulation.
    lhs = acc.astype(jnp.bfloat16).reshape(h * w, cin)
    y = jnp.dot(lhs, wp_ref[...], preferred_element_type=jnp.float32)

    # BatchNorm (inference, pre-folded into scale/shift) + ReLU6.
    y = y * scale_ref[...] + shift_ref[...]
    y = jnp.minimum(jnp.maximum(y, 0.0), 6.0)
    o_ref[...] = y.reshape(h, w, cout)


# ---------------------------------------------------------------------------
# Wrappers
# ---------------------------------------------------------------------------

def _dwsep_pallas(xp_nhwc, wd, wp_bf16, scale, shift, *, out_h, out_w):
    n, hpad, wpad, cin = xp_nhwc.shape
    cout = wp_bf16.shape[1]
    return pl.pallas_call(
        dwsep_kernel,
        out_shape=jax.ShapeDtypeStruct((n, out_h, out_w, cout), jnp.float32),
        grid_spec=pltpu.PrefetchScalarGridSpec(
            num_scalar_prefetch=0,
            grid=(n,),                      # coarse grid: one image per step
            in_specs=[
                pl.BlockSpec((None, hpad, wpad, cin), lambda i: (i, 0, 0, 0)),
                pl.BlockSpec((9, cin), lambda i: (0, 0)),
                pl.BlockSpec((cin, cout), lambda i: (0, 0)),
                pl.BlockSpec((1, cout), lambda i: (0, 0)),
                pl.BlockSpec((1, cout), lambda i: (0, 0)),
            ],
            out_specs=pl.BlockSpec((None, out_h, out_w, cout),
                                   lambda i: (i, 0, 0, 0)),
        ),
        compiler_params=pltpu.CompilerParams(
            dimension_semantics=("parallel",)),
    )(xp_nhwc, wd, wp_bf16, scale, shift)


def prepare_kernel_params(params, eps=1e-5):
    """One-time (outside jit) re-layout of the PyTorch-style parameters so the
    jitted forward does no weight transposes/casts (perf review item #1)."""
    dw = params["dw_w"]                              # (C, 1, 3, 3)
    pw = params["pw_w"]                              # (Cout, C, 1, 1)
    c, cout = dw.shape[0], pw.shape[0]
    wd = jnp.transpose(dw[:, 0], (1, 2, 0)).reshape(9, c)              # (9, C)  f32
    wp = jnp.transpose(pw[:, :, 0, 0], (1, 0)).astype(jnp.bfloat16)    # (C, Cout) bf16
    scale = params["bn_gamma"] / jnp.sqrt(params["bn_var"] + eps)
    shift = params["bn_beta"] - params["bn_mean"] * scale
    return {
        "wd": wd,
        "wp": wp,
        "scale": scale.reshape(1, cout).astype(jnp.float32),
        "shift": shift.reshape(1, cout).astype(jnp.float32),
    }


@jax.jit
def dwsep_forward(x_nchw, kparams):
    """DepthwiseSeparableConv forward (stride=1), NCHW in / NCHW out."""
    # TODO(synk): depthwise stride > 1 is not implemented (module default
    # stride=1 is what this kernel covers).
    n, c, h, w = x_nchw.shape
    x = jnp.transpose(x_nchw, (0, 2, 3, 1))                   # NCHW -> NHWC
    xp = jnp.pad(x, ((0, 0), (1, 1), (1, 1), (0, 0)))         # pad=1 on H, W
    out_nhwc = _dwsep_pallas(xp, kparams["wd"], kparams["wp"],
                             kparams["scale"], kparams["shift"],
                             out_h=h, out_w=w)
    return jnp.transpose(out_nhwc, (0, 3, 1, 2))              # NHWC -> NCHW


# ---------------------------------------------------------------------------
# Pure-JAX references
# ---------------------------------------------------------------------------

def reference_strict_f32(x_nchw, params, eps=1e-5):
    """Independent strict-f32 re-implementation of the PyTorch forward
    (eval-mode BatchNorm) using XLA grouped conv at HIGHEST precision."""
    dw, pw = params["dw_w"], params["pw_w"]
    c = dw.shape[0]
    y = lax.conv_general_dilated(
        x_nchw, dw, window_strides=(1, 1), padding=((1, 1), (1, 1)),
        dimension_numbers=("NCHW", "OIHW", "NCHW"),
        feature_group_count=c, precision=lax.Precision.HIGHEST)
    y = lax.conv_general_dilated(
        y, pw, window_strides=(1, 1), padding=((0, 0), (0, 0)),
        dimension_numbers=("NCHW", "OIHW", "NCHW"),
        precision=lax.Precision.HIGHEST)
    scale = params["bn_gamma"] / jnp.sqrt(params["bn_var"] + eps)
    shift = params["bn_beta"] - params["bn_mean"] * scale
    y = y * scale.reshape(1, -1, 1, 1) + shift.reshape(1, -1, 1, 1)
    return jnp.clip(y, 0.0, 6.0)


def reference_bf16_matched(x_nchw, params, eps=1e-5):
    """Reference that mirrors the kernel's arithmetic exactly: same depthwise
    tap order in f32, bf16 MXU operands for the pointwise, f32 accumulation."""
    dw, pw = params["dw_w"], params["pw_w"]
    c, cout = dw.shape[0], pw.shape[0]
    x = jnp.transpose(x_nchw, (0, 2, 3, 1))
    n, h, w, _ = x.shape
    xp = jnp.pad(x, ((0, 0), (1, 1), (1, 1), (0, 0)))
    wd = jnp.transpose(dw[:, 0], (1, 2, 0)).reshape(9, c)
    acc = xp[:, 0:h, 0:w, :] * wd[0:1].reshape(1, 1, 1, c)
    for k in range(1, 9):
        kh, kw = divmod(k, 3)
        acc = acc + xp[:, kh:kh + h, kw:kw + w, :] * wd[k:k + 1].reshape(1, 1, 1, c)
    wp = jnp.transpose(pw[:, :, 0, 0], (1, 0)).astype(jnp.bfloat16)
    y = jnp.dot(acc.astype(jnp.bfloat16).reshape(n * h * w, c), wp,
                preferred_element_type=jnp.float32).reshape(n, h, w, cout)
    scale = params["bn_gamma"] / jnp.sqrt(params["bn_var"] + eps)
    shift = params["bn_beta"] - params["bn_mean"] * scale
    y = y * scale.reshape(1, 1, 1, cout) + shift.reshape(1, 1, 1, cout)
    y = jnp.minimum(jnp.maximum(y, 0.0), 6.0)
    return jnp.transpose(y, (0, 3, 1, 2))


# ---------------------------------------------------------------------------

if __name__ == "__main__":
    key = jax.random.PRNGKey(0)
    ks = jax.random.split(key, 8)

    N, C, COUT, H, W = 2, 16, 32, 16, 16

    params = {
        "dw_w": 0.3 * jax.random.normal(ks[0], (C, 1, 3, 3), jnp.float32),
        "pw_w": 0.1 * jax.random.normal(ks[1], (COUT, C, 1, 1), jnp.float32),
        "bn_gamma": 1.0 + 0.1 * jax.random.normal(ks[2], (COUT,), jnp.float32),
        # Large beta on channel 0 so the ReLU6 upper clamp is exercised.
        "bn_beta": (0.2 * jax.random.normal(ks[3], (COUT,), jnp.float32)
                    ).at[0].set(5.5),
        "bn_mean": 0.1 * jax.random.normal(ks[4], (COUT,), jnp.float32),
        "bn_var": 0.8 + 0.4 * jax.random.uniform(ks[5], (COUT,), jnp.float32),
    }
    x = jax.random.normal(ks[6], (N, C, H, W), jnp.float32)

    kparams = prepare_kernel_params(params)      # one-time re-layout, outside jit

    out = jax.block_until_ready(dwsep_forward(x, kparams))
    ref_matched = jax.block_until_ready(jax.jit(reference_bf16_matched)(x, params))
    ref_f32 = jax.block_until_ready(jax.jit(reference_strict_f32)(x, params))

    # Tight check against the arithmetic-matched reference.  Not 1e-5 because
    # a single bf16-ulp rounding difference of one depthwise activation (the
    # two compilers may differ by an f32 ulp before the bf16 cast) is ~1e-3 at
    # these magnitudes.
    np.testing.assert_allclose(np.asarray(out), np.asarray(ref_matched),
                               rtol=2e-3, atol=2e-3)
    # Strict-f32 (PyTorch-exact, eval-mode BN) check: the only deviation is the
    # deliberate bf16 cast of the pointwise MXU operands (per perf review).
    np.testing.assert_allclose(np.asarray(out), np.asarray(ref_f32),
                               rtol=2e-2, atol=2e-2)
    print("KERNEL_OK")
</pallas_src>

<mosaic_0001>
module attributes {stable_mosaic.version = 11 : i64} {
  func.func @dwsep_kernel(%arg0: i32, %arg1: memref<1x18x18x16xf32, #tpu.memory_space<vmem>>, %arg2: memref<9x16xf32, #tpu.memory_space<vmem>>, %arg3: memref<16x32xbf16, #tpu.memory_space<vmem>>, %arg4: memref<1x32xf32, #tpu.memory_space<vmem>>, %arg5: memref<1x32xf32, #tpu.memory_space<vmem>>, %arg6: memref<1x16x16x32xf32, #tpu.memory_space<vmem>>) attributes {dimension_semantics = [#tpu.dimension_semantics<parallel>], iteration_bounds = array<i64: 2>, scalar_prefetch = 0 : i64, scratch_operands = 0 : i64, tpu.core_type = #tpu.core_type<tc>, window_params = [{transform_indices = @transform_0, window_bounds = array<i64: 1, 18, 18, 16>}, {pipeline_mode = #tpu.pipeline_mode<synchronous>, transform_indices = @transform_1, window_bounds = array<i64: 9, 16>}, {pipeline_mode = #tpu.pipeline_mode<synchronous>, transform_indices = @transform_2, window_bounds = array<i64: 16, 32>}, {pipeline_mode = #tpu.pipeline_mode<synchronous>, transform_indices = @transform_3, window_bounds = array<i64: 1, 32>}, {pipeline_mode = #tpu.pipeline_mode<synchronous>, transform_indices = @transform_4, window_bounds = array<i64: 1, 32>}, {transform_indices = @transform_5, window_bounds = array<i64: 1, 16, 16, 32>}]} {
    %c0 = arith.constant 0 : index
    %c0_0 = arith.constant 0 : index
    %0 = vector.load %arg2[%c0, %c0_0] : memref<9x16xf32, #tpu.memory_space<vmem>>, vector<9x16xf32>
    %c0_1 = arith.constant 0 : index
    %c0_2 = arith.constant 0 : index
    %c0_3 = arith.constant 0 : index
    %c0_4 = arith.constant 0 : index
    %1 = vector.load %arg1[%c0_1, %c0_2, %c0_3, %c0_4] : memref<1x18x18x16xf32, #tpu.memory_space<vmem>>, vector<1x16x16x16xf32>
    %2 = vector.shape_cast %1 : vector<1x16x16x16xf32> to vector<16x16x16xf32>
    %3 = vector.extract_strided_slice %0 {offsets = [0, 0], sizes = [1, 16], strides = [1, 1]} : vector<9x16xf32> to vector<1x16xf32>
    %4 = vector.shape_cast %3 : vector<1x16xf32> to vector<1x1x16xf32>
    %5 = vector.broadcast %4 : vector<1x1x16xf32> to vector<16x16x16xf32>
    %6 = arith.mulf %2, %5 : vector<16x16x16xf32>
    %c0_5 = arith.constant 0 : index
    %c0_6 = arith.constant 0 : index
    %c1 = arith.constant 1 : index
    %c0_7 = arith.constant 0 : index
    %7 = vector.load %arg1[%c0_5, %c0_6, %c1, %c0_7] : memref<1x18x18x16xf32, #tpu.memory_space<vmem>>, vector<1x16x16x16xf32>
    %8 = vector.shape_cast %7 : vector<1x16x16x16xf32> to vector<16x16x16xf32>
    %9 = vector.extract_strided_slice %0 {offsets = [1, 0], sizes = [1, 16], strides = [1, 1]} : vector<9x16xf32> to vector<1x16xf32>
    %10 = vector.shape_cast %9 : vector<1x16xf32> to vector<1x1x16xf32>
    %11 = vector.broadcast %10 : vector<1x1x16xf32> to vector<16x16x16xf32>
    %12 = arith.mulf %8, %11 : vector<16x16x16xf32>
    %13 = arith.addf %6, %12 : vector<16x16x16xf32>
    %c0_8 = arith.constant 0 : index
    %c0_9 = arith.constant 0 : index
    %c2 = arith.constant 2 : index
    %c0_10 = arith.constant 0 : index
    %14 = vector.load %arg1[%c0_8, %c0_9, %c2, %c0_10] : memref<1x18x18x16xf32, #tpu.memory_space<vmem>>, vector<1x16x16x16xf32>
    %15 = vector.shape_cast %14 : vector<1x16x16x16xf32> to vector<16x16x16xf32>
    %16 = vector.extract_strided_slice %0 {offsets = [2, 0], sizes = [1, 16], strides = [1, 1]} : vector<9x16xf32> to vector<1x16xf32>
    %17 = vector.shape_cast %16 : vector<1x16xf32> to vector<1x1x16xf32>
    %18 = vector.broadcast %17 : vector<1x1x16xf32> to vector<16x16x16xf32>
    %19 = arith.mulf %15, %18 : vector<16x16x16xf32>
    %20 = arith.addf %13, %19 : vector<16x16x16xf32>
    %c0_11 = arith.constant 0 : index
    %c1_12 = arith.constant 1 : index
    %c0_13 = arith.constant 0 : index
    %c0_14 = arith.constant 0 : index
    %21 = vector.load %arg1[%c0_11, %c1_12, %c0_13, %c0_14] : memref<1x18x18x16xf32, #tpu.memory_space<vmem>>, vector<1x16x16x16xf32>
    %22 = vector.shape_cast %21 : vector<1x16x16x16xf32> to vector<16x16x16xf32>
    %23 = vector.extract_strided_slice %0 {offsets = [3, 0], sizes = [1, 16], strides = [1, 1]} : vector<9x16xf32> to vector<1x16xf32>
    %24 = vector.shape_cast %23 : vector<1x16xf32> to vector<1x1x16xf32>
    %25 = vector.broadcast %24 : vector<1x1x16xf32> to vector<16x16x16xf32>
    %26 = arith.mulf %22, %25 : vector<16x16x16xf32>
    %27 = arith.addf %20, %26 : vector<16x16x16xf32>
    %c0_15 = arith.constant 0 : index
    %c1_16 = arith.constant 1 : index
    %c1_17 = arith.constant 1 : index
    %c0_18 = arith.constant 0 : index
    %28 = vector.load %arg1[%c0_15, %c1_16, %c1_17, %c0_18] : memref<1x18x18x16xf32, #tpu.memory_space<vmem>>, vector<1x16x16x16xf32>
    %29 = vector.shape_cast %28 : vector<1x16x16x16xf32> to vector<16x16x16xf32>
    %30 = vector.extract_strided_slice %0 {offsets = [4, 0], sizes = [1, 16], strides = [1, 1]} : vector<9x16xf32> to vector<1x16xf32>
    %31 = vector.shape_cast %30 : vector<1x16xf32> to vector<1x1x16xf32>
    %32 = vector.broadcast %31 : vector<1x1x16xf32> to vector<16x16x16xf32>
    %33 = arith.mulf %29, %32 : vector<16x16x16xf32>
    %34 = arith.addf %27, %33 : vector<16x16x16xf32>
    %c0_19 = arith.constant 0 : index
    %c1_20 = arith.constant 1 : index
    %c2_21 = arith.constant 2 : index
    %c0_22 = arith.constant 0 : index
    %35 = vector.load %arg1[%c0_19, %c1_20, %c2_21, %c0_22] : memref<1x18x18x16xf32, #tpu.memory_space<vmem>>, vector<1x16x16x16xf32>
    %36 = vector.shape_cast %35 : vector<1x16x16x16xf32> to vector<16x16x16xf32>
    %37 = vector.extract_strided_slice %0 {offsets = [5, 0], sizes = [1, 16], strides = [1, 1]} : vector<9x16xf32> to vector<1x16xf32>
    %38 = vector.shape_cast %37 : vector<1x16xf32> to vector<1x1x16xf32>
    %39 = vector.broadcast %38 : vector<1x1x16xf32> to vector<16x16x16xf32>
    %40 = arith.mulf %36, %39 : vector<16x16x16xf32>
    %41 = arith.addf %34, %40 : vector<16x16x16xf32>
    %c0_23 = arith.constant 0 : index
    %c2_24 = arith.constant 2 : index
    %c0_25 = arith.constant 0 : index
    %c0_26 = arith.constant 0 : index
    %42 = vector.load %arg1[%c0_23, %c2_24, %c0_25, %c0_26] : memref<1x18x18x16xf32, #tpu.memory_space<vmem>>, vector<1x16x16x16xf32>
    %43 = vector.shape_cast %42 : vector<1x16x16x16xf32> to vector<16x16x16xf32>
    %44 = vector.extract_strided_slice %0 {offsets = [6, 0], sizes = [1, 16], strides = [1, 1]} : vector<9x16xf32> to vector<1x16xf32>
    %45 = vector.shape_cast %44 : vector<1x16xf32> to vector<1x1x16xf32>
    %46 = vector.broadcast %45 : vector<1x1x16xf32> to vector<16x16x16xf32>
    %47 = arith.mulf %43, %46 : vector<16x16x16xf32>
    %48 = arith.addf %41, %47 : vector<16x16x16xf32>
    %c0_27 = arith.constant 0 : index
    %c2_28 = arith.constant 2 : index
    %c1_29 = arith.constant 1 : index
    %c0_30 = arith.constant 0 : index
    %49 = vector.load %arg1[%c0_27, %c2_28, %c1_29, %c0_30] : memref<1x18x18x16xf32, #tpu.memory_space<vmem>>, vector<1x16x16x16xf32>
    %50 = vector.shape_cast %49 : vector<1x16x16x16xf32> to vector<16x16x16xf32>
    %51 = vector.extract_strided_slice %0 {offsets = [7, 0], sizes = [1, 16], strides = [1, 1]} : vector<9x16xf32> to vector<1x16xf32>
    %52 = vector.shape_cast %51 : vector<1x16xf32> to vector<1x1x16xf32>
    %53 = vector.broadcast %52 : vector<1x1x16xf32> to vector<16x16x16xf32>
    %54 = arith.mulf %50, %53 : vector<16x16x16xf32>
    %55 = arith.addf %48, %54 : vector<16x16x16xf32>
    %c0_31 = arith.constant 0 : index
    %c2_32 = arith.constant 2 : index
    %c2_33 = arith.constant 2 : index
    %c0_34 = arith.constant 0 : index
    %56 = vector.load %arg1[%c0_31, %c2_32, %c2_33, %c0_34] : memref<1x18x18x16xf32, #tpu.memory_space<vmem>>, vector<1x16x16x16xf32>
    %57 = vector.shape_cast %56 : vector<1x16x16x16xf32> to vector<16x16x16xf32>
    %58 = vector.extract_strided_slice %0 {offsets = [8, 0], sizes = [1, 16], strides = [1, 1]} : vector<9x16xf32> to vector<1x16xf32>
    %59 = vector.shape_cast %58 : vector<1x16xf32> to vector<1x1x16xf32>
    %60 = vector.broadcast %59 : vector<1x1x16xf32> to vector<16x16x16xf32>
    %61 = arith.mulf %57, %60 : vector<16x16x16xf32>
    %62 = arith.addf %55, %61 : vector<16x16x16xf32>
    %63 = arith.truncf %62 : vector<16x16x16xf32> to vector<16x16x16xbf16>
    %64 = vector.shape_cast %63 : vector<16x16x16xbf16> to vector<256x16xbf16>
    %c0_35 = arith.constant 0 : index
    %c0_36 = arith.constant 0 : index
    %65 = vector.load %arg3[%c0_35, %c0_36] : memref<16x32xbf16, #tpu.memory_space<vmem>>, vector<16x32xbf16>
    %cst = arith.constant dense<0.000000e+00> : vector<256x32xf32>
    %66 = tpu.matmul %64, %65, %cst {dimension_numbers = #tpu.dot_dimension_numbers<[1], [0], [0], [1], [0, 0, 1, 1], [], []>} : vector<256x16xbf16>, vector<16x32xbf16>, vector<256x32xf32> -> vector<256x32xf32>
    %c0_37 = arith.constant 0 : index
    %c0_38 = arith.constant 0 : index
    %67 = vector.load %arg4[%c0_37, %c0_38] : memref<1x32xf32, #tpu.memory_space<vmem>>, vector<1x32xf32>
    %68 = vector.broadcast %67 : vector<1x32xf32> to vector<256x32xf32>
    %69 = arith.mulf %66, %68 : vector<256x32xf32>
    %c0_39 = arith.constant 0 : index
    %c0_40 = arith.constant 0 : index
    %70 = vector.load %arg5[%c0_39, %c0_40] : memref<1x32xf32, #tpu.memory_space<vmem>>, vector<1x32xf32>
    %71 = vector.broadcast %70 : vector<1x32xf32> to vector<256x32xf32>
    %72 = arith.addf %69, %71 : vector<256x32xf32>
    %cst_41 = arith.constant 0.000000e+00 : f32
    %73 = vector.broadcast %cst_41 : f32 to vector<256x32xf32>
    %74 = arith.maximumf %72, %73 : vector<256x32xf32>
    %cst_42 = arith.constant 6.000000e+00 : f32
    %75 = vector.broadcast %cst_42 : f32 to vector<256x32xf32>
    %76 = arith.minimumf %74, %75 : vector<256x32xf32>
    %77 = vector.shape_cast %76 : vector<256x32xf32> to vector<16x16x32xf32>
    %c0_43 = arith.constant 0 : index
    %c0_44 = arith.constant 0 : index
    %c0_45 = arith.constant 0 : index
    %c0_46 = arith.constant 0 : index
    %78 = vector.load %arg6[%c0_43, %c0_44, %c0_45, %c0_46] : memref<1x16x16x32xf32, #tpu.memory_space<vmem>>, vector<1x16x16x32xf32>
    %79 = vector.shape_cast %78 : vector<1x16x16x32xf32> to vector<16x16x32xf32>
    %80 = vector.shape_cast %77 : vector<16x16x32xf32> to vector<1x16x16x32xf32>
    tpu.vector_store %arg6[%c0_43, %c0_44, %c0_45, %c0_46], %80 {strides = array<i32>} : memref<1x16x16x32xf32, #tpu.memory_space<vmem>>, vector<1x16x16x32xf32>,
    return
  }
  func.func @transform_0(%arg0: i32) -> (i32, i32, i32, i32) {
    %c0_i32 = arith.constant 0 : i32
    %c0_i32_0 = arith.constant 0 : i32
    %c0_i32_1 = arith.constant 0 : i32
    %c0_i32_2 = arith.constant 0 : i32
    return %arg0, %c0_i32, %c0_i32_0, %c0_i32_1 : i32, i32, i32, i32
  }
  func.func @transform_1(%arg0: i32) -> (i32, i32) {
    %c0_i32 = arith.constant 0 : i32
    %c0_i32_0 = arith.constant 0 : i32
    %c0_i32_1 = arith.constant 0 : i32
    return %c0_i32, %c0_i32_0 : i32, i32
  }
  func.func @transform_2(%arg0: i32) -> (i32, i32) {
    %c0_i32 = arith.constant 0 : i32
    %c0_i32_0 = arith.constant 0 : i32
    %c0_i32_1 = arith.constant 0 : i32
    return %c0_i32, %c0_i32_0 : i32, i32
  }
  func.func @transform_3(%arg0: i32) -> (i32, i32) {
    %c0_i32 = arith.constant 0 : i32
    %c0_i32_0 = arith.constant 0 : i32
    %c0_i32_1 = arith.constant 0 : i32
    return %c0_i32, %c0_i32_0 : i32, i32
  }
  func.func @transform_4(%arg0: i32) -> (i32, i32) {
    %c0_i32 = arith.constant 0 : i32
    %c0_i32_0 = arith.constant 0 : i32
    %c0_i32_1 = arith.constant 0 : i32
    return %c0_i32, %c0_i32_0 : i32, i32
  }
  func.func @transform_5(%arg0: i32) -> (i32, i32, i32, i32) {
    %c0_i32 = arith.constant 0 : i32
    %c0_i32_0 = arith.constant 0 : i32
    %c0_i32_1 = arith.constant 0 : i32
    %c0_i32_2 = arith.constant 0 : i32
    return %arg0, %c0_i32, %c0_i32_0, %c0_i32_1 : i32, i32, i32, i32
  }
}

</mosaic_0001>

<llo_original>
// kernel: dwsep_forward.1
$region0: #{dwsep_forward.1}
  #allocation0 [shape = 'u32[]', space=smem, size = 0x4, offset = 0x4, fixed_abs, tag = 'smem constant byte address 0x4 - core index']
  #allocation1 [shape = 'u32[144,128]{1,0:T(1,128)}', space=vmem, size = 0x12000, scoped, tag = 'internal scratch']
  %s0 = inlined_call_operand.vmem [shape: f32[2,18,18,16], index: 0, kind: input, shape index: {}]
  %s1 = inlined_call_operand.vmem [shape: f32[9,16], index: 1, kind: input, shape index: {}]
  %s2 = inlined_call_operand.vmem [shape: bf16[16,32], index: 2, kind: input, shape index: {}]
  %s3 = inlined_call_operand.vmem [shape: f32[1,32], index: 3, kind: input, shape index: {}]
  %s4 = inlined_call_operand.vmem [shape: f32[1,32], index: 4, kind: input, shape index: {}]
  %s5 = inlined_call_operand.hbm [shape: f32[2,16,16,32], index: 5, kind: output, shape index: {}]
  %s6 = sld [smem:[#allocation0]]
  $region53: #{dwsep_forward.1} parent=0
    _
  %s8 = ssub.s32 1, %s6
  %s9 = scalar_select 0, %s8, %s6
  $region1: #{dwsep_forward.1} parent=0
    #allocation2 [shape = 'u8[262144]{0}', space=vmem, size = 0x40000, scoped, tag = 'output window, operand 0']
    #allocation3 [shape = 's32[2]{0}', space=sflag, size = 0x8, scoped, tag = 'scoped memory for dwsep_forward.1']
    %10 = vsyncpa [#allocation3], 0
    %s11 = scalar_lea.sflag [#allocation3], 1
    %12 = vsyncpa %s11, 0
    loop: start=0, step=1, limit=4
    $region2: #{dwsep_forward.1} parent=1 // loop_pre_header
      _
    $region3: #{dwsep_forward.1} parent=1 // loop_header
      %s14 = sphi 0, %s18
      %p15 = scmp.ge.s32.totalorder %s14, 4
      %s24 = sphi 0, %s26
      %s27 = sphi 0, %s24
      %s28 = sphi 0, %s27
      %s44 = sphi 0, %s28
      %s48 = sphi 0, %s48
      %s50 = sphi 0, %s48
      %s51 = sphi 0, %s50
      %s65 = sphi 0, %s51
      %s69 = sphi 0, %s69
      %s71 = sphi 0, %s69
      %s72 = sphi 0, %s71
      %s86 = sphi 0, %s72
      %s90 = sphi 0, %s90
      %s92 = sphi 0, %s90
      %s93 = sphi 0, %s92
      %s107 = sphi 0, %s93
      %s111 = sphi 0, %s111
      %s113 = sphi 0, %s111
      %s114 = sphi 0, %s113
      %s128 = sphi 0, %s114
      %s134 = sphi 0, %s136
      %s137 = sphi 0, %s134
      %s138 = sphi 0, %s137
      %s154 = sphi 0, %s138
    $region4: #{dwsep_forward.1} parent=1 // loop_header_branch
      %17 = sbr.rel (%p15) target = $region8
    $region5: #{dwsep_forward.1} parent=1 // loop_body
      %s19 = ssub.s32 %s14, 1
      %s20 = ssub.s32 %s14, 2
      %s21 = sadd.s32 %s14, 1
      %s22 = ssub.s32 %s14, %s21
      %p23 = scmp.eq.s32.totalorder %s22, 0
      %s25 = sadd.s32 %s24, 1
      %s26 = scalar_select %p23, %s24, %s25
      %p29 = pneg %p23
      %p30 = scmp.eq.s32.totalorder %s14, 1
      %p31 = por %p29, %p30
      %p32 = scmp.ne.s32.totalorder %s24, %s27
      %p33 = scmp.eq.s32.totalorder %s14, 0
      %p34 = por %p32, %p33
      %p35 = scmp.ne.s32.totalorder %s24, %s27
      %p36 = scmp.eq.s32.totalorder %s19, 1
      %p37 = por %p35, %p36
      %p38 = scmp.ne.s32.totalorder %s27, %s28
      %p39 = scmp.eq.s32.totalorder %s19, 0
      %p40 = por %p38, %p39
      %p41 = scmp.ne.s32.totalorder %s27, %s28
      %p42 = scmp.eq.s32.totalorder %s20, 1
      %p43 = por %p41, %p42
      %p45 = scmp.ne.s32.totalorder %s28, %s44
      %p46 = scmp.eq.s32.totalorder %s20, 0
      %p47 = por %p45, %p46
      %s49 = sadd.s32 %s48, 1
      %p52 = scmp.eq.s32.totalorder %s14, 1
      %p53 = scmp.ne.s32.totalorder %s48, %s50
      %p54 = scmp.eq.s32.totalorder %s14, 0
      %p55 = por %p53, %p54
      %p56 = scmp.ne.s32.totalorder %s48, %s50
      %p57 = scmp.eq.s32.totalorder %s19, 1
      %p58 = por %p56, %p57
      %p59 = scmp.ne.s32.totalorder %s50, %s51
      %p60 = scmp.eq.s32.totalorder %s19, 0
      %p61 = por %p59, %p60
      %p62 = scmp.ne.s32.totalorder %s50, %s51
      %p63 = scmp.eq.s32.totalorder %s20, 1
      %p64 = por %p62, %p63
      %p66 = scmp.ne.s32.totalorder %s51, %s65
      %p67 = scmp.eq.s32.totalorder %s20, 0
      %p68 = por %p66, %p67
      %s70 = sadd.s32 %s69, 1
      %p73 = scmp.eq.s32.totalorder %s14, 1
      %p74 = scmp.ne.s32.totalorder %s69, %s71
      %p75 = scmp.eq.s32.totalorder %s14, 0
      %p76 = por %p74, %p75
      %p77 = scmp.ne.s32.totalorder %s69, %s71
      %p78 = scmp.eq.s32.totalorder %s19, 1
      %p79 = por %p77, %p78
      %p80 = scmp.ne.s32.totalorder %s71, %s72
      %p81 = scmp.eq.s32.totalorder %s19, 0
      %p82 = por %p80, %p81
      %p83 = scmp.ne.s32.totalorder %s71, %s72
      %p84 = scmp.eq.s32.totalorder %s20, 1
      %p85 = por %p83, %p84
      %p87 = scmp.ne.s32.totalorder %s72, %s86
      %p88 = scmp.eq.s32.totalorder %s20, 0
      %p89 = por %p87, %p88
      %s91 = sadd.s32 %s90, 1
      %p94 = scmp.eq.s32.totalorder %s14, 1
      %p95 = scmp.ne.s32.totalorder %s90, %s92
      %p96 = scmp.eq.s32.totalorder %s14, 0
      %p97 = por %p95, %p96
      %p98 = scmp.ne.s32.totalorder %s90, %s92
      %p99 = scmp.eq.s32.totalorder %s19, 1
      %p100 = por %p98, %p99
      %p101 = scmp.ne.s32.totalorder %s92, %s93
      %p102 = scmp.eq.s32.totalorder %s19, 0
      %p103 = por %p101, %p102
      %p104 = scmp.ne.s32.totalorder %s92, %s93
      %p105 = scmp.eq.s32.totalorder %s20, 1
      %p106 = por %p104, %p105
      %p108 = scmp.ne.s32.totalorder %s93, %s107
      %p109 = scmp.eq.s32.totalorder %s20, 0
      %p110 = por %p108, %p109
      %s112 = sadd.s32 %s111, 1
      %p115 = scmp.eq.s32.totalorder %s14, 1
      %p116 = scmp.ne.s32.totalorder %s111, %s113
      %p117 = scmp.eq.s32.totalorder %s14, 0
      %p118 = por %p116, %p117
      %p119 = scmp.ne.s32.totalorder %s111, %s113
      %p120 = scmp.eq.s32.totalorder %s19, 1
      %p121 = por %p119, %p120
      %p122 = scmp.ne.s32.totalorder %s113, %s114
      %p123 = scmp.eq.s32.totalorder %s19, 0
      %p124 = por %p122, %p123
      %p125 = scmp.ne.s32.totalorder %s113, %s114
      %p126 = scmp.eq.s32.totalorder %s20, 1
      %p127 = por %p125, %p126
      %p129 = scmp.ne.s32.totalorder %s114, %s128
      %p130 = scmp.eq.s32.totalorder %s20, 0
      %p131 = por %p129, %p130
      %s132 = ssub.s32 %s14, %s21
      %p133 = scmp.eq.s32.totalorder %s132, 0
      %s135 = sadd.s32 %s134, 1
      %s136 = scalar_select %p133, %s134, %s135
      %p139 = pneg %p133
      %p140 = scmp.eq.s32.totalorder %s14, 1
      %p141 = por %p139, %p140
      %p142 = scmp.ne.s32.totalorder %s134, %s137
      %p143 = scmp.eq.s32.totalorder %s14, 0
      %p144 = por %p142, %p143
      %p145 = scmp.ne.s32.totalorder %s134, %s137
      %p146 = scmp.eq.s32.totalorder %s19, 1
      %p147 = por %p145, %p146
      %p148 = scmp.ne.s32.totalorder %s137, %s138
      %p149 = scmp.eq.s32.totalorder %s19, 0
      %p150 = por %p148, %p149
      %p151 = scmp.ne.s32.totalorder %s137, %s138
      %p152 = scmp.eq.s32.totalorder %s20, 1
      %p153 = por %p151, %p152
      %p155 = scmp.ne.s32.totalorder %s138, %s154
      %p156 = scmp.eq.s32.totalorder %s20, 0
      %p157 = por %p155, %p156
      %p158 = scmp.le.s32.totalorder 1, %s14
      %p159 = scmp.lt.s32.totalorder %s14, 3
      %p160 = pnand %p158, %p159
      %p161 = pneg %p160
      // Predicated region
      $region9: #{dwsep_forward.1} parent=5 // pred_check
        _
      $region10: #{dwsep_forward.1} parent=5 // pred_check_branch
        %163 = sbr.rel (%p160) target = $region12
      $region11: #{dwsep_forward.1} parent=5 // pred_region
        %s164 = ssub.s32 %s14, 1
        // Predicated region
        $region13: #{dwsep_forward.1} parent=11 // pred_check
          %p165 = pneg %p61
        $region14: #{dwsep_forward.1} parent=11 // pred_check_branch
          %167 = sbr.rel (%p165) target = $region16
        $region15: #{dwsep_forward.1} parent=11 // pred_region
          _
        $region16: #{dwsep_forward.1} parent=11 // pred_fallthru
          _
        // Predicated region
        $region17: #{dwsep_forward.1} parent=11 // pred_check
          %p168 = pneg %p82
        $region18: #{dwsep_forward.1} parent=11 // pred_check_branch
          %170 = sbr.rel (%p168) target = $region20
        $region19: #{dwsep_forward.1} parent=11 // pred_region
          _
        $region20: #{dwsep_forward.1} parent=11 // pred_fallthru
          _
        // Predicated region
        $region21: #{dwsep_forward.1} parent=11 // pred_check
          %p171 = pneg %p103
        $region22: #{dwsep_forward.1} parent=11 // pred_check_branch
          %173 = sbr.rel (%p171) target = $region24
        $region23: #{dwsep_forward.1} parent=11 // pred_region
          _
        $region24: #{dwsep_forward.1} parent=11 // pred_fallthru
          _
        // Predicated region
        $region25: #{dwsep_forward.1} parent=11 // pred_check
          %p174 = pneg %p124
        $region26: #{dwsep_forward.1} parent=11 // pred_check_branch
          %176 = sbr.rel (%p174) target = $region28
        $region27: #{dwsep_forward.1} parent=11 // pred_region
          _
        $region28: #{dwsep_forward.1} parent=11 // pred_fallthru
          _
      $region12: #{dwsep_forward.1} parent=5 // pred_fallthru
        _
      %p177 = scmp.lt.s32.totalorder %s14, 2
      // Predicated region
      $region29: #{dwsep_forward.1} parent=5 // pred_check
        %p178 = pneg %p177
      $region30: #{dwsep_forward.1} parent=5 // pred_check_branch
        %180 = sbr.rel (%p178) target = $region32
      $region31: #{dwsep_forward.1} parent=5 // pred_region
        // Predicated region
        $region33: #{dwsep_forward.1} parent=31 // pred_check
          %p181 = pneg %p34
        $region34: #{dwsep_forward.1} parent=31 // pred_check_branch
          %183 = sbr.rel (%p181) target = $region36
        $region35: #{dwsep_forward.1} parent=31 // pred_region
          %p184 = scmp.lt.s32.totalorder %s14, 1
          %s185 = scalar_select %p184, %s14, 1
          %s186 = smul.addr %s185, 54
          %s187 = smul.addr %s186, 8
          %s188 = scalar_lea.vmem %s0, %s187
        $region36: #{dwsep_forward.1} parent=31 // pred_fallthru
          _
      $region32: #{dwsep_forward.1} parent=5 // pred_fallthru
        _
      %p189 = scmp.le.s32.totalorder 1, %s14
      %p190 = scmp.lt.s32.totalorder %s14, 3
      %p191 = pnand %p189, %p190
      %p192 = pneg %p191
      // Predicated region
      $region37: #{dwsep_forward.1} parent=5 // pred_check
        _
      $region38: #{dwsep_forward.1} parent=5 // pred_check_branch
        %194 = sbr.rel (%p191) target = $region40
      $region39: #{dwsep_forward.1} parent=5 // pred_region
        %s195 = ssub.s32 %s14, 1
        %p196 = scmp.lt.s32.totalorder %s19, 1
        %s197 = scalar_select %p196, %s19, 1
        %s198 = smul.addr %s197, 54
        %s199 = smul.addr %s198, 8
        %s200 = scalar_lea.vmem %s0, %s199
        %p201 = pneg %p40
        %p202 = pneg %p37
        %p203 = pneg %p61
        %p204 = pneg %p58
        %p205 = pneg %p82
        %p206 = pneg %p79
        %p207 = pneg %p103
        %p208 = pneg %p100
        %p209 = pneg %p124
        %p210 = pneg %p121
        %p211 = pneg %p150
        %p212 = pneg %p147
        %s213 = sand.u32 %s137, 1
        %s214 = scalar_lea.sflag [#allocation3], %s213
        %s215 = sand.u32 %s137, 1
        %s216 = smul.addr %s215, 256
        %s217 = scalar_lea.vmem [#allocation2], %s216
        %p218 = scmp.lt.s32.totalorder %s19, 1
        %s219 = scalar_select %p218, %s19, 1
        %s220 = smul.addr %s219, 54
        %s221 = smul.addr %s220, 8
        %s222 = scalar_lea.vmem %s0, %s221
        %v224 = vld [vmem:[%s1] sm:$0xff]
        %v225 = vld [vmem:[%s1 + $0x8] sm:$0x1]
        %v226 = vld [vmem:[%s222] sm:$0xff]
        %v227 = vld [vmem:[%s222 + $0x8] sm:$0xff]
        %v228 = vld [vmem:[%s222 + $0x18] sm:$0xff]
        %v229 = vld [vmem:[%s222 + $0x20] sm:$0xff]
        %v230 = vld [vmem:[%s222 + $0x30] sm:$0xff]
        %v231 = vld [vmem:[%s222 + $0x38] sm:$0xff]
        %v232 = vld [vmem:[%s222 + $0x48] sm:$0xff]
        %v233 = vld [vmem:[%s222 + $0x50] sm:$0xff]
        %v234 = vld [vmem:[%s222 + $0x60] sm:$0xff]
        %v235 = vld [vmem:[%s222 + $0x68] sm:$0xff]
        %v236 = vld [vmem:[%s222 + $0x78] sm:$0xff]
        %v237 = vld [vmem:[%s222 + $0x80] sm:$0xff]
        %v238 = vld [vmem:[%s222 + $0x90] sm:$0xff]
        %v239 = vld [vmem:[%s222 + $0x98] sm:$0xff]
        %v240 = vld [vmem:[%s222 + $0xa8] sm:$0xff]
        %v241 = vld [vmem:[%s222 + $0xb0] sm:$0xff]
        %v242 = vld [vmem:[%s222 + $0xc0] sm:$0xff]
        %v243 = vld [vmem:[%s222 + $0xc8] sm:$0xff]
        %v244 = vld [vmem:[%s222 + $0xd8] sm:$0xff]
        %v245 = vld [vmem:[%s222 + $0xe0] sm:$0xff]
        %v246 = vld [vmem:[%s222 + $0xf0] sm:$0xff]
        %v247 = vld [vmem:[%s222 + $0xf8] sm:$0xff]
        %v248 = vld [vmem:[%s222 + $0x108] sm:$0xff]
        %v249 = vld [vmem:[%s222 + $0x110] sm:$0xff]
        %v250 = vld [vmem:[%s222 + $0x120] sm:$0xff]
        %v251 = vld [vmem:[%s222 + $0x128] sm:$0xff]
        %v252 = vld [vmem:[%s222 + $0x138] sm:$0xff]
        %v253 = vld [vmem:[%s222 + $0x140] sm:$0xff]
        %v254 = vld [vmem:[%s222 + $0x150] sm:$0xff]
        %v255 = vld [vmem:[%s222 + $0x158] sm:$0xff]
        %v256 = vld [vmem:[%s222 + $0x168] sm:$0xff]
        %v257 = vld [vmem:[%s222 + $0x170] sm:$0xff]
        %v258 = vlaneseq
        %v259 = vshrl.u32 %v258, 7
        %v260 = vsub.s32 0, %v259
        %v261 = vrot.slane %v224, %v260
        %v262 = vmul.f32 %v226, %v261
        %v263 = vmul.f32 %v227, %v261
        %v264 = vmul.f32 %v228, %v261
        %v265 = vmul.f32 %v229, %v261
        %v266 = vmul.f32 %v230, %v261
        %v267 = vmul.f32 %v231, %v261
        %v268 = vmul.f32 %v232, %v261
        %v269 = vmul.f32 %v233, %v261
        %v270 = vmul.f32 %v234, %v261
        %v271 = vmul.f32 %v235, %v261
        %v272 = vmul.f32 %v236, %v261
        %v273 = vmul.f32 %v237, %v261
        %v274 = vmul.f32 %v238, %v261
        %v275 = vmul.f32 %v239, %v261
        %v276 = vmul.f32 %v240, %v261
        %v277 = vmul.f32 %v241, %v261
        %v278 = vmul.f32 %v242, %v261
        %v279 = vmul.f32 %v243, %v261
        %v280 = vmul.f32 %v244, %v261
        %v281 = vmul.f32 %v245, %v261
        %v282 = vmul.f32 %v246, %v261
        %v283 = vmul.f32 %v247, %v261
        %v284 = vmul.f32 %v248, %v261
        %v285 = vmul.f32 %v249, %v261
        %v286 = vmul.f32 %v250, %v261
        %v287 = vmul.f32 %v251, %v261
        %v288 = vmul.f32 %v252, %v261
        %v289 = vmul.f32 %v253, %v261
        %v290 = vmul.f32 %v254, %v261
        %v291 = vmul.f32 %v255, %v261
        %v292 = vmul.f32 %v256, %v261
        %v293 = vmul.f32 %v257, %v261
        %v294 = vld [vmem:[%s222 + $0x1] sm:$0xff]
        %v295 = vld [vmem:[%s222 + $0x9] sm:$0xff]
        %v296 = vld [vmem:[%s222 + $0x19] sm:$0xff]
        %v297 = vld [vmem:[%s222 + $0x21] sm:$0xff]
        %v298 = vld [vmem:[%s222 + $0x31] sm:$0xff]
        %v299 = vld [vmem:[%s222 + $0x39] sm:$0xff]
        %v300 = vld [vmem:[%s222 + $0x49] sm:$0xff]
        %v301 = vld [vmem:[%s222 + $0x51] sm:$0xff]
        %v302 = vld [vmem:[%s222 + $0x61] sm:$0xff]
        %v303 = vld [vmem:[%s222 + $0x69] sm:$0xff]
        %v304 = vld [vmem:[%s222 + $0x79] sm:$0xff]
        %v305 = vld [vmem:[%s222 + $0x81] sm:$0xff]
        %v306 = vld [vmem:[%s222 + $0x91] sm:$0xff]
        %v307 = vld [vmem:[%s222 + $0x99] sm:$0xff]
        %v308 = vld [vmem:[%s222 + $0xa9] sm:$0xff]
        %v309 = vld [vmem:[%s222 + $0xb1] sm:$0xff]
        %v310 = vld [vmem:[%s222 + $0xc1] sm:$0xff]
        %v311 = vld [vmem:[%s222 + $0xc9] sm:$0xff]
        %v312 = vld [vmem:[%s222 + $0xd9] sm:$0xff]
        %v313 = vld [vmem:[%s222 + $0xe1] sm:$0xff]
        %v314 = vld [vmem:[%s222 + $0xf1] sm:$0xff]
        %v315 = vld [vmem:[%s222 + $0xf9] sm:$0xff]
        %v316 = vld [vmem:[%s222 + $0x109] sm:$0xff]
        %v317 = vld [vmem:[%s222 + $0x111] sm:$0xff]
        %v318 = vld [vmem:[%s222 + $0x121] sm:$0xff]
        %v319 = vld [vmem:[%s222 + $0x129] sm:$0xff]
        %v320 = vld [vmem:[%s222 + $0x139] sm:$0xff]
        %v321 = vld [vmem:[%s222 + $0x141] sm:$0xff]
        %v322 = vld [vmem:[%s222 + $0x151] sm:$0xff]
        %v323 = vld [vmem:[%s222 + $0x159] sm:$0xff]
        %v324 = vld [vmem:[%s222 + $0x169] sm:$0xff]
        %v325 = vld [vmem:[%s222 + $0x171] sm:$0xff]
        %v326 = vlaneseq
        %v327 = vshrl.u32 %v326, 7
        %v328 = vsub.s32 1, %v327
        %v329 = vrot.slane %v224, %v328
        %v330 = vmul.f32 %v294, %v329
        %v331 = vmul.f32 %v295, %v329
        %v332 = vmul.f32 %v296, %v329
        %v333 = vmul.f32 %v297, %v329
        %v334 = vmul.f32 %v298, %v329
        %v335 = vmul.f32 %v299, %v329
        %v336 = vmul.f32 %v300, %v329
        %v337 = vmul.f32 %v301, %v329
        %v338 = vmul.f32 %v302, %v329
        %v339 = vmul.f32 %v303, %v329
        %v340 = vmul.f32 %v304, %v329
        %v341 = vmul.f32 %v305, %v329
        %v342 = vmul.f32 %v306, %v329
        %v343 = vmul.f32 %v307, %v329
        %v344 = vmul.f32 %v308, %v329
        %v345 = vmul.f32 %v309, %v329
        %v346 = vmul.f32 %v310, %v329
        %v347 = vmul.f32 %v311, %v329
        %v348 = vmul.f32 %v312, %v329
        %v349 = vmul.f32 %v313, %v329
        %v350 = vmul.f32 %v314, %v329
        %v351 = vmul.f32 %v315, %v329
        %v352 = vmul.f32 %v316, %v329
        %v353 = vmul.f32 %v317, %v329
        %v354 = vmul.f32 %v318, %v329
        %v355 = vmul.f32 %v319, %v329
        %v356 = vmul.f32 %v320, %v329
        %v357 = vmul.f32 %v321, %v329
        %v358 = vmul.f32 %v322, %v329
        %v359 = vmul.f32 %v323, %v329
        %v360 = vmul.f32 %v324, %v329
        %v361 = vmul.f32 %v325, %v329
        %v362 = vadd.f32 %v262, %v330
        %v363 = vadd.f32 %v263, %v331
        %v364 = vadd.f32 %v264, %v332
        %v365 = vadd.f32 %v265, %v333
        %v366 = vadd.f32 %v266, %v334
        %v367 = vadd.f32 %v267, %v335
        %v368 = vadd.f32 %v268, %v336
        %v369 = vadd.f32 %v269, %v337
        %v370 = vadd.f32 %v270, %v338
        %v371 = vadd.f32 %v271, %v339
        %v372 = vadd.f32 %v272, %v340
        %v373 = vadd.f32 %v273, %v341
        %v374 = vadd.f32 %v274, %v342
        %v375 = vadd.f32 %v275, %v343
        %v376 = vadd.f32 %v276, %v344
        %v377 = vadd.f32 %v277, %v345
        %v378 = vadd.f32 %v278, %v346
        %v379 = vadd.f32 %v279, %v347
        %v380 = vadd.f32 %v280, %v348
        %v381 = vadd.f32 %v281, %v349
        %v382 = vadd.f32 %v282, %v350
        %v383 = vadd.f32 %v283, %v351
        %v384 = vadd.f32 %v284, %v352
        %v385 = vadd.f32 %v285, %v353
        %v386 = vadd.f32 %v286, %v354
        %v387 = vadd.f32 %v287, %v355
        %v388 = vadd.f32 %v288, %v356
        %v389 = vadd.f32 %v289, %v357
        %v390 = vadd.f32 %v290, %v358
        %v391 = vadd.f32 %v291, %v359
        %v392 = vadd.f32 %v292, %v360
        %v393 = vadd.f32 %v293, %v361
        %v394 = vld [vmem:[%s222 + $0x2] sm:$0xff]
        %v395 = vld [vmem:[%s222 + $0xa] sm:$0xff]
        %v396 = vld [vmem:[%s222 + $0x1a] sm:$0xff]
        %v397 = vld [vmem:[%s222 + $0x22] sm:$0xff]
        %v398 = vld [vmem:[%s222 + $0x32] sm:$0xff]
        %v399 = vld [vmem:[%s222 + $0x3a] sm:$0xff]
        %v400 = vld [vmem:[%s222 + $0x4a] sm:$0xff]
        %v401 = vld [vmem:[%s222 + $0x52] sm:$0xff]
        %v402 = vld [vmem:[%s222 + $0x62] sm:$0xff]
        %v403 = vld [vmem:[%s222 + $0x6a] sm:$0xff]
        %v404 = vld [vmem:[%s222 + $0x7a] sm:$0xff]
        %v405 = vld [vmem:[%s222 + $0x82] sm:$0xff]
        %v406 = vld [vmem:[%s222 + $0x92] sm:$0xff]
        %v407 = vld [vmem:[%s222 + $0x9a] sm:$0xff]
        %v408 = vld [vmem:[%s222 + $0xaa] sm:$0xff]
        %v409 = vld [vmem:[%s222 + $0xb2] sm:$0xff]
        %v410 = vld [vmem:[%s222 + $0xc2] sm:$0xff]
        %v411 = vld [vmem:[%s222 + $0xca] sm:$0xff]
        %v412 = vld [vmem:[%s222 + $0xda] sm:$0xff]
        %v413 = vld [vmem:[%s222 + $0xe2] sm:$0xff]
        %v414 = vld [vmem:[%s222 + $0xf2] sm:$0xff]
        %v415 = vld [vmem:[%s222 + $0xfa] sm:$0xff]
        %v416 = vld [vmem:[%s222 + $0x10a] sm:$0xff]
        %v417 = vld [vmem:[%s222 + $0x112] sm:$0xff]
        %v418 = vld [vmem:[%s222 + $0x122] sm:$0xff]
        %v419 = vld [vmem:[%s222 + $0x12a] sm:$0xff]
        %v420 = vld [vmem:[%s222 + $0x13a] sm:$0xff]
        %v421 = vld [vmem:[%s222 + $0x142] sm:$0xff]
        %v422 = vld [vmem:[%s222 + $0x152] sm:$0xff]
        %v423 = vld [vmem:[%s222 + $0x15a] sm:$0xff]
        %v424 = vld [vmem:[%s222 + $0x16a] sm:$0xff]
        %v425 = vld [vmem:[%s222 + $0x172] sm:$0xff]
        %v426 = vlaneseq
        %v427 = vshrl.u32 %v426, 7
        %v428 = vsub.s32 2, %v427
        %v429 = vrot.slane %v224, %v428
        %v430 = vmul.f32 %v394, %v429
        %v431 = vmul.f32 %v395, %v429
        %v432 = vmul.f32 %v396, %v429
        %v433 = vmul.f32 %v397, %v429
        %v434 = vmul.f32 %v398, %v429
        %v435 = vmul.f32 %v399, %v429
        %v436 = vmul.f32 %v400, %v429
        %v437 = vmul.f32 %v401, %v429
        %v438 = vmul.f32 %v402, %v429
        %v439 = vmul.f32 %v403, %v429
        %v440 = vmul.f32 %v404, %v429
        %v441 = vmul.f32 %v405, %v429
        %v442 = vmul.f32 %v406, %v429
        %v443 = vmul.f32 %v407, %v429
        %v444 = vmul.f32 %v408, %v429
        %v445 = vmul.f32 %v409, %v429
        %v446 = vmul.f32 %v410, %v429
        %v447 = vmul.f32 %v411, %v429
        %v448 = vmul.f32 %v412, %v429
        %v449 = vmul.f32 %v413, %v429
        %v450 = vmul.f32 %v414, %v429
        %v451 = vmul.f32 %v415, %v429
        %v452 = vmul.f32 %v416, %v429
        %v453 = vmul.f32 %v417, %v429
        %v454 = vmul.f32 %v418, %v429
        %v455 = vmul.f32 %v419, %v429
        %v456 = vmul.f32 %v420, %v429
        %v457 = vmul.f32 %v421, %v429
        %v458 = vmul.f32 %v422, %v429
        %v459 = vmul.f32 %v423, %v429
        %v460 = vmul.f32 %v424, %v429
        %v461 = vmul.f32 %v425, %v429
        %v462 = vadd.f32 %v362, %v430
        %v463 = vadd.f32 %v363, %v431
        %v464 = vadd.f32 %v364, %v432
        %v465 = vadd.f32 %v365, %v433
        %v466 = vadd.f32 %v366, %v434
        %v467 = vadd.f32 %v367, %v435
        %v468 = vadd.f32 %v368, %v436
        %v469 = vadd.f32 %v369, %v437
        %v470 = vadd.f32 %v370, %v438
        %v471 = vadd.f32 %v371, %v439
        %v472 = vadd.f32 %v372, %v440
        %v473 = vadd.f32 %v373, %v441
        %v474 = vadd.f32 %v374, %v442
        %v475 = vadd.f32 %v375, %v443
        %v476 = vadd.f32 %v376, %v444
        %v477 = vadd.f32 %v377, %v445
        %v478 = vadd.f32 %v378, %v446
        %v479 = vadd.f32 %v379, %v447
        %v480 = vadd.f32 %v380, %v448
        %v481 = vadd.f32 %v381, %v449
        %v482 = vadd.f32 %v382, %v450
        %v483 = vadd.f32 %v383, %v451
        %v484 = vadd.f32 %v384, %v452
        %v485 = vadd.f32 %v385, %v453
        %v486 = vadd.f32 %v386, %v454
        %v487 = vadd.f32 %v387, %v455
        %v488 = vadd.f32 %v388, %v456
        %v489 = vadd.f32 %v389, %v457
        %v490 = vadd.f32 %v390, %v458
        %v491 = vadd.f32 %v391, %v459
        %v492 = vadd.f32 %v392, %v460
        %v493 = vadd.f32 %v393, %v461
        %s494 = scalar_lea.vmem %s222, 24
        %v495 = vld [vmem:[%s494] sm:$0xff]
        %v496 = vld [vmem:[%s494 + $0x8] sm:$0xff]
        %v497 = vld [vmem:[%s494 + $0x18] sm:$0xff]
        %v498 = vld [vmem:[%s494 + $0x20] sm:$0xff]
        %v499 = vld [vmem:[%s494 + $0x30] sm:$0xff]
        %v500 = vld [vmem:[%s494 + $0x38] sm:$0xff]
        %v501 = vld [vmem:[%s494 + $0x48] sm:$0xff]
        %v502 = vld [vmem:[%s494 + $0x50] sm:$0xff]
        %v503 = vld [vmem:[%s494 + $0x60] sm:$0xff]
        %v504 = vld [vmem:[%s494 + $0x68] sm:$0xff]
        %v505 = vld [vmem:[%s494 + $0x78] sm:$0xff]
        %v506 = vld [vmem:[%s494 + $0x80] sm:$0xff]
        %v507 = vld [vmem:[%s494 + $0x90] sm:$0xff]
        %v508 = vld [vmem:[%s494 + $0x98] sm:$0xff]
        %v509 = vld [vmem:[%s494 + $0xa8] sm:$0xff]
        %v510 = vld [vmem:[%s494 + $0xb0] sm:$0xff]
        %v511 = vld [vmem:[%s494 + $0xc0] sm:$0xff]
        %v512 = vld [vmem:[%s494 + $0xc8] sm:$0xff]
        %v513 = vld [vmem:[%s494 + $0xd8] sm:$0xff]
        %v514 = vld [vmem:[%s494 + $0xe0] sm:$0xff]
        %v515 = vld [vmem:[%s494 + $0xf0] sm:$0xff]
        %v516 = vld [vmem:[%s494 + $0xf8] sm:$0xff]
        %v517 = vld [vmem:[%s494 + $0x108] sm:$0xff]
        %v518 = vld [vmem:[%s494 + $0x110] sm:$0xff]
        %v519 = vld [vmem:[%s494 + $0x120] sm:$0xff]
        %v520 = vld [vmem:[%s494 + $0x128] sm:$0xff]
        %v521 = vld [vmem:[%s494 + $0x138] sm:$0xff]
        %v522 = vld [vmem:[%s494 + $0x140] sm:$0xff]
        %v523 = vld [vmem:[%s494 + $0x150] sm:$0xff]
        %v524 = vld [vmem:[%s494 + $0x158] sm:$0xff]
        %v525 = vld [vmem:[%s494 + $0x168] sm:$0xff]
        %v526 = vld [vmem:[%s494 + $0x170] sm:$0xff]
        %v527 = vlaneseq
        %v528 = vshrl.u32 %v527, 7
        %v529 = vsub.s32 3, %v528
        %v530 = vrot.slane %v224, %v529
        %v531 = vmul.f32 %v495, %v530
        %v532 = vmul.f32 %v496, %v530
        %v533 = vmul.f32 %v497, %v530
        %v534 = vmul.f32 %v498, %v530
        %v535 = vmul.f32 %v499, %v530
        %v536 = vmul.f32 %v500, %v530
        %v537 = vmul.f32 %v501, %v530
        %v538 = vmul.f32 %v502, %v530
        %v539 = vmul.f32 %v503, %v530
        %v540 = vmul.f32 %v504, %v530
        %v541 = vmul.f32 %v505, %v530
        %v542 = vmul.f32 %v506, %v530
        %v543 = vmul.f32 %v507, %v530
        %v544 = vmul.f32 %v508, %v530
        %v545 = vmul.f32 %v509, %v530
        %v546 = vmul.f32 %v510, %v530
        %v547 = vmul.f32 %v511, %v530
        %v548 = vmul.f32 %v512, %v530
        %v549 = vmul.f32 %v513, %v530
        %v550 = vmul.f32 %v514, %v530
        %v551 = vmul.f32 %v515, %v530
        %v552 = vmul.f32 %v516, %v530
        %v553 = vmul.f32 %v517, %v530
        %v554 = vmul.f32 %v518, %v530
        %v555 = vmul.f32 %v519, %v530
        %v556 = vmul.f32 %v520, %v530
        %v557 = vmul.f32 %v521, %v530
        %v558 = vmul.f32 %v522, %v530
        %v559 = vmul.f32 %v523, %v530
        %v560 = vmul.f32 %v524, %v530
        %v561 = vmul.f32 %v525, %v530
        %v562 = vmul.f32 %v526, %v530
        %v563 = vadd.f32 %v462, %v531
        %v564 = vadd.f32 %v463, %v532
        %v565 = vadd.f32 %v464, %v533
        %v566 = vadd.f32 %v465, %v534
        %v567 = vadd.f32 %v466, %v535
        %v568 = vadd.f32 %v467, %v536
        %v569 = vadd.f32 %v468, %v537
        %v570 = vadd.f32 %v469, %v538
        %v571 = vadd.f32 %v470, %v539
        %v572 = vadd.f32 %v471, %v540
        %v573 = vadd.f32 %v472, %v541
        %v574 = vadd.f32 %v473, %v542
        %v575 = vadd.f32 %v474, %v543
        %v576 = vadd.f32 %v475, %v544
        %v577 = vadd.f32 %v476, %v545
        %v578 = vadd.f32 %v477, %v546
        %v579 = vadd.f32 %v478, %v547
        %v580 = vadd.f32 %v479, %v548
        %v581 = vadd.f32 %v480, %v549
        %v582 = vadd.f32 %v481, %v550
        %v583 = vadd.f32 %v482, %v551
        %v584 = vadd.f32 %v483, %v552
        %v585 = vadd.f32 %v484, %v553
        %v586 = vadd.f32 %v485, %v554
        %v587 = vadd.f32 %v486, %v555
        %v588 = vadd.f32 %v487, %v556
        %v589 = vadd.f32 %v488, %v557
        %v590 = vadd.f32 %v489, %v558
        %v591 = vadd.f32 %v490, %v559
        %v592 = vadd.f32 %v491, %v560
        %v593 = vadd.f32 %v492, %v561
        %v594 = vadd.f32 %v493, %v562
        %v595 = vld [vmem:[%s494 + $0x1] sm:$0xff]
        %v596 = vld [vmem:[%s494 + $0x9] sm:$0xff]
        %v597 = vld [vmem:[%s494 + $0x19] sm:$0xff]
        %v598 = vld [vmem:[%s494 + $0x21] sm:$0xff]
        %v599 = vld [vmem:[%s494 + $0x31] sm:$0xff]
        %v600 = vld [vmem:[%s494 + $0x39] sm:$0xff]
        %v601 = vld [vmem:[%s494 + $0x49] sm:$0xff]
        %v602 = vld [vmem:[%s494 + $0x51] sm:$0xff]
        %v603 = vld [vmem:[%s494 + $0x61] sm:$0xff]
        %v604 = vld [vmem:[%s494 + $0x69] sm:$0xff]
        %v605 = vld [vmem:[%s494 + $0x79] sm:$0xff]
        %v606 = vld [vmem:[%s494 + $0x81] sm:$0xff]
        %v607 = vld [vmem:[%s494 + $0x91] sm:$0xff]
        %v608 = vld [vmem:[%s494 + $0x99] sm:$0xff]
        %v609 = vld [vmem:[%s494 + $0xa9] sm:$0xff]
        %v610 = vld [vmem:[%s494 + $0xb1] sm:$0xff]
        %v611 = vld [vmem:[%s494 + $0xc1] sm:$0xff]
        %v612 = vld [vmem:[%s494 + $0xc9] sm:$0xff]
        %v613 = vld [vmem:[%s494 + $0xd9] sm:$0xff]
        %v614 = vld [vmem:[%s494 + $0xe1] sm:$0xff]
        %v615 = vld [vmem:[%s494 + $0xf1] sm:$0xff]
        %v616 = vld [vmem:[%s494 + $0xf9] sm:$0xff]
        %v617 = vld [vmem:[%s494 + $0x109] sm:$0xff]
        %v618 = vld [vmem:[%s494 + $0x111] sm:$0xff]
        %v619 = vld [vmem:[%s494 + $0x121] sm:$0xff]
        %v620 = vld [vmem:[%s494 + $0x129] sm:$0xff]
        %v621 = vld [vmem:[%s494 + $0x139] sm:$0xff]
        %v622 = vld [vmem:[%s494 + $0x141] sm:$0xff]
        %v623 = vld [vmem:[%s494 + $0x151] sm:$0xff]
        %v624 = vld [vmem:[%s494 + $0x159] sm:$0xff]
        %v625 = vld [vmem:[%s494 + $0x169] sm:$0xff]
        %v626 = vld [vmem:[%s494 + $0x171] sm:$0xff]
        %v627 = vlaneseq
        %v628 = vshrl.u32 %v627, 7
        %v629 = vsub.s32 4, %v628
        %v630 = vrot.slane %v224, %v629
        %v631 = vmul.f32 %v595, %v630
        %v632 = vmul.f32 %v596, %v630
        %v633 = vmul.f32 %v597, %v630
        %v634 = vmul.f32 %v598, %v630
        %v635 = vmul.f32 %v599, %v630
        %v636 = vmul.f32 %v600, %v630
        %v637 = vmul.f32 %v601, %v630
        %v638 = vmul.f32 %v602, %v630
        %v639 = vmul.f32 %v603, %v630
        %v640 = vmul.f32 %v604, %v630
        %v641 = vmul.f32 %v605, %v630
        %v642 = vmul.f32 %v606, %v630
        %v643 = vmul.f32 %v607, %v630
        %v644 = vmul.f32 %v608, %v630
        %v645 = vmul.f32 %v609, %v630
        %v646 = vmul.f32 %v610, %v630
        %v647 = vmul.f32 %v611, %v630
        %v648 = vmul.f32 %v612, %v630
        %v649 = vmul.f32 %v613, %v630
        %v650 = vmul.f32 %v614, %v630
        %v651 = vmul.f32 %v615, %v630
        %v652 = vmul.f32 %v616, %v630
        %v653 = vmul.f32 %v617, %v630
        %v654 = vmul.f32 %v618, %v630
        %v655 = vmul.f32 %v619, %v630
        %v656 = vmul.f32 %v620, %v630
        %v657 = vmul.f32 %v621, %v630
        %v658 = vmul.f32 %v622, %v630
        %v659 = vmul.f32 %v623, %v630
        %v660 = vmul.f32 %v624, %v630
        %v661 = vmul.f32 %v625, %v630
        %v662 = vmul.f32 %v626, %v630
        %v663 = vadd.f32 %v563, %v631
        %v664 = vadd.f32 %v564, %v632
        %v665 = vadd.f32 %v565, %v633
        %v666 = vadd.f32 %v566, %v634
        %v667 = vadd.f32 %v567, %v635
        %v668 = vadd.f32 %v568, %v636
        %v669 = vadd.f32 %v569, %v637
        %v670 = vadd.f32 %v570, %v638
        %v671 = vadd.f32 %v571, %v639
        %v672 = vadd.f32 %v572, %v640
        %v673 = vadd.f32 %v573, %v641
        %v674 = vadd.f32 %v574, %v642
        %v675 = vadd.f32 %v575, %v643
        %v676 = vadd.f32 %v576, %v644
        %v677 = vadd.f32 %v577, %v645
        %v678 = vadd.f32 %v578, %v646
        %v679 = vadd.f32 %v579, %v647
        %v680 = vadd.f32 %v580, %v648
        %v681 = vadd.f32 %v581, %v649
        %v682 = vadd.f32 %v582, %v650
        %v683 = vadd.f32 %v583, %v651
        %v684 = vadd.f32 %v584, %v652
        %v685 = vadd.f32 %v585, %v653
        %v686 = vadd.f32 %v586, %v654
        %v687 = vadd.f32 %v587, %v655
        %v688 = vadd.f32 %v588, %v656
        %v689 = vadd.f32 %v589, %v657
        %v690 = vadd.f32 %v590, %v658
        %v691 = vadd.f32 %v591, %v659
        %v692 = vadd.f32 %v592, %v660
        %v693 = vadd.f32 %v593, %v661
        %v694 = vadd.f32 %v594, %v662
        %v695 = vld [vmem:[%s494 + $0x2] sm:$0xff]
        %v696 = vld [vmem:[%s494 + $0xa] sm:$0xff]
        %v697 = vld [vmem:[%s494 + $0x1a] sm:$0xff]
        %v698 = vld [vmem:[%s494 + $0x22] sm:$0xff]
        %v699 = vld [vmem:[%s494 + $0x32] sm:$0xff]
        %v700 = vld [vmem:[%s494 + $0x3a] sm:$0xff]
        %v701 = vld [vmem:[%s494 + $0x4a] sm:$0xff]
        %v702 = vld [vmem:[%s494 + $0x52] sm:$0xff]
        %v703 = vld [vmem:[%s494 + $0x62] sm:$0xff]
        %v704 = vld [vmem:[%s494 + $0x6a] sm:$0xff]
        %v705 = vld [vmem:[%s494 + $0x7a] sm:$0xff]
        %v706 = vld [vmem:[%s494 + $0x82] sm:$0xff]
        %v707 = vld [vmem:[%s494 + $0x92] sm:$0xff]
        %v708 = vld [vmem:[%s494 + $0x9a] sm:$0xff]
        %v709 = vld [vmem:[%s494 + $0xaa] sm:$0xff]
        %v710 = vld [vmem:[%s494 + $0xb2] sm:$0xff]
        %v711 = vld [vmem:[%s494 + $0xc2] sm:$0xff]
        %v712 = vld [vmem:[%s494 + $0xca] sm:$0xff]
        %v713 = vld [vmem:[%s494 + $0xda] sm:$0xff]
        %v714 = vld [vmem:[%s494 + $0xe2] sm:$0xff]
        %v715 = vld [vmem:[%s494 + $0xf2] sm:$0xff]
        %v716 = vld [vmem:[%s494 + $0xfa] sm:$0xff]
        %v717 = vld [vmem:[%s494 + $0x10a] sm:$0xff]
        %v718 = vld [vmem:[%s494 + $0x112] sm:$0xff]
        %v719 = vld [vmem:[%s494 + $0x122] sm:$0xff]
        %v720 = vld [vmem:[%s494 + $0x12a] sm:$0xff]
        %v721 = vld [vmem:[%s494 + $0x13a] sm:$0xff]
        %v722 = vld [vmem:[%s494 + $0x142] sm:$0xff]
        %v723 = vld [vmem:[%s494 + $0x152] sm:$0xff]
        %v724 = vld [vmem:[%s494 + $0x15a] sm:$0xff]
        %v725 = vld [vmem:[%s494 + $0x16a] sm:$0xff]
        %v726 = vld [vmem:[%s494 + $0x172] sm:$0xff]
        %v727 = vlaneseq
        %v728 = vshrl.u32 %v727, 7
        %v729 = vsub.s32 5, %v728
        %v730 = vrot.slane %v224, %v729
        %v731 = vmul.f32 %v695, %v730
        %v732 = vmul.f32 %v696, %v730
        %v733 = vmul.f32 %v697, %v730
        %v734 = vmul.f32 %v698, %v730
        %v735 = vmul.f32 %v699, %v730
        %v736 = vmul.f32 %v700, %v730
        %v737 = vmul.f32 %v701, %v730
        %v738 = vmul.f32 %v702, %v730
        %v739 = vmul.f32 %v703, %v730
        %v740 = vmul.f32 %v704, %v730
        %v741 = vmul.f32 %v705, %v730
        %v742 = vmul.f32 %v706, %v730
        %v743 = vmul.f32 %v707, %v730
        %v744 = vmul.f32 %v708, %v730
        %v745 = vmul.f32 %v709, %v730
        %v746 = vmul.f32 %v710, %v730
        %v747 = vmul.f32 %v711, %v730
        %v748 = vmul.f32 %v712, %v730
        %v749 = vmul.f32 %v713, %v730
        %v750 = vmul.f32 %v714, %v730
        %v751 = vmul.f32 %v715, %v730
        %v752 = vmul.f32 %v716, %v730
        %v753 = vmul.f32 %v717, %v730
        %v754 = vmul.f32 %v718, %v730
        %v755 = vmul.f32 %v719, %v730
        %v756 = vmul.f32 %v720, %v730
        %v757 = vmul.f32 %v721, %v730
        %v758 = vmul.f32 %v722, %v730
        %v759 = vmul.f32 %v723, %v730
        %v760 = vmul.f32 %v724, %v730
        %v761 = vmul.f32 %v725, %v730
        %v762 = vmul.f32 %v726, %v730
        %v763 = vadd.f32 %v663, %v731
        %v764 = vadd.f32 %v664, %v732
        %v765 = vadd.f32 %v665, %v733
        %v766 = vadd.f32 %v666, %v734
        %v767 = vadd.f32 %v667, %v735
        %v768 = vadd.f32 %v668, %v736
        %v769 = vadd.f32 %v669, %v737
        %v770 = vadd.f32 %v670, %v738
        %v771 = vadd.f32 %v671, %v739
        %v772 = vadd.f32 %v672, %v740
        %v773 = vadd.f32 %v673, %v741
        %v774 = vadd.f32 %v674, %v742
        %v775 = vadd.f32 %v675, %v743
        %v776 = vadd.f32 %v676, %v744
        %v777 = vadd.f32 %v677, %v745
        %v778 = vadd.f32 %v678, %v746
        %v779 = vadd.f32 %v679, %v747
        %v780 = vadd.f32 %v680, %v748
        %v781 = vadd.f32 %v681, %v749
        %v782 = vadd.f32 %v682, %v750
        %v783 = vadd.f32 %v683, %v751
        %v784 = vadd.f32 %v684, %v752
        %v785 = vadd.f32 %v685, %v753
        %v786 = vadd.f32 %v686, %v754
        %v787 = vadd.f32 %v687, %v755
        %v788 = vadd.f32 %v688, %v756
        %v789 = vadd.f32 %v689, %v757
        %v790 = vadd.f32 %v690, %v758
        %v791 = vadd.f32 %v691, %v759
        %v792 = vadd.f32 %v692, %v760
        %v793 = vadd.f32 %v693, %v761
        %v794 = vadd.f32 %v694, %v762
        %s795 = scalar_lea.vmem %s222, 48
        %v796 = vld [vmem:[%s795] sm:$0xff]
        %v797 = vld [vmem:[%s795 + $0x8] sm:$0xff]
        %v798 = vld [vmem:[%s795 + $0x18] sm:$0xff]
        %v799 = vld [vmem:[%s795 + $0x20] sm:$0xff]
        %v800 = vld [vmem:[%s795 + $0x30] sm:$0xff]
        %v801 = vld [vmem:[%s795 + $0x38] sm:$0xff]
        %v802 = vld [vmem:[%s795 + $0x48] sm:$0xff]
        %v803 = vld [vmem:[%s795 + $0x50] sm:$0xff]
        %v804 = vld [vmem:[%s795 + $0x60] sm:$0xff]
        %v805 = vld [vmem:[%s795 + $0x68] sm:$0xff]
        %v806 = vld [vmem:[%s795 + $0x78] sm:$0xff]
        %v807 = vld [vmem:[%s795 + $0x80] sm:$0xff]
        %v808 = vld [vmem:[%s795 + $0x90] sm:$0xff]
        %v809 = vld [vmem:[%s795 + $0x98] sm:$0xff]
        %v810 = vld [vmem:[%s795 + $0xa8] sm:$0xff]
        %v811 = vld [vmem:[%s795 + $0xb0] sm:$0xff]
        %v812 = vld [vmem:[%s795 + $0xc0] sm:$0xff]
        %v813 = vld [vmem:[%s795 + $0xc8] sm:$0xff]
        %v814 = vld [vmem:[%s795 + $0xd8] sm:$0xff]
        %v815 = vld [vmem:[%s795 + $0xe0] sm:$0xff]
        %v816 = vld [vmem:[%s795 + $0xf0] sm:$0xff]
        %v817 = vld [vmem:[%s795 + $0xf8] sm:$0xff]
        %v818 = vld [vmem:[%s795 + $0x108] sm:$0xff]
        %v819 = vld [vmem:[%s795 + $0x110] sm:$0xff]
        %v820 = vld [vmem:[%s795 + $0x120] sm:$0xff]
        %v821 = vld [vmem:[%s795 + $0x128] sm:$0xff]
        %v822 = vld [vmem:[%s795 + $0x138] sm:$0xff]
        %v823 = vld [vmem:[%s795 + $0x140] sm:$0xff]
        %v824 = vld [vmem:[%s795 + $0x150] sm:$0xff]
        %v825 = vld [vmem:[%s795 + $0x158] sm:$0xff]
        %v826 = vld [vmem:[%s795 + $0x168] sm:$0xff]
        %v827 = vld [vmem:[%s795 + $0x170] sm:$0xff]
        %v828 = vlaneseq
        %v829 = vshrl.u32 %v828, 7
        %v830 = vsub.s32 6, %v829
        %v831 = vrot.slane %v224, %v830
        %v832 = vmul.f32 %v796, %v831
        %v833 = vmul.f32 %v797, %v831
        %v834 = vmul.f32 %v798, %v831
        %v835 = vmul.f32 %v799, %v831
        %v836 = vmul.f32 %v800, %v831
        %v837 = vmul.f32 %v801, %v831
        %v838 = vmul.f32 %v802, %v831
        %v839 = vmul.f32 %v803, %v831
        %v840 = vmul.f32 %v804, %v831
        %v841 = vmul.f32 %v805, %v831
        %v842 = vmul.f32 %v806, %v831
        %v843 = vmul.f32 %v807, %v831
        %v844 = vmul.f32 %v808, %v831
        %v845 = vmul.f32 %v809, %v831
        %v846 = vmul.f32 %v810, %v831
        %v847 = vmul.f32 %v811, %v831
        %v848 = vmul.f32 %v812, %v831
        %v849 = vmul.f32 %v813, %v831
        %v850 = vmul.f32 %v814, %v831
        %v851 = vmul.f32 %v815, %v831
        %v852 = vmul.f32 %v816, %v831
        %v853 = vmul.f32 %v817, %v831
        %v854 = vmul.f32 %v818, %v831
        %v855 = vmul.f32 %v819, %v831
        %v856 = vmul.f32 %v820, %v831
        %v857 = vmul.f32 %v821, %v831
        %v858 = vmul.f32 %v822, %v831
        %v859 = vmul.f32 %v823, %v831
        %v860 = vmul.f32 %v824, %v831
        %v861 = vmul.f32 %v825, %v831
        %v862 = vmul.f32 %v826, %v831
        %v863 = vmul.f32 %v827, %v831
        %v864 = vadd.f32 %v763, %v832
        %v865 = vadd.f32 %v764, %v833
        %v866 = vadd.f32 %v765, %v834
        %v867 = vadd.f32 %v766, %v835
        %v868 = vadd.f32 %v767, %v836
        %v869 = vadd.f32 %v768, %v837
        %v870 = vadd.f32 %v769, %v838
        %v871 = vadd.f32 %v770, %v839
        %v872 = vadd.f32 %v771, %v840
        %v873 = vadd.f32 %v772, %v841
        %v874 = vadd.f32 %v773, %v842
        %v875 = vadd.f32 %v774, %v843
        %v876 = vadd.f32 %v775, %v844
        %v877 = vadd.f32 %v776, %v845
        %v878 = vadd.f32 %v777, %v846
        %v879 = vadd.f32 %v778, %v847
        %v880 = vadd.f32 %v779, %v848
        %v881 = vadd.f32 %v780, %v849
        %v882 = vadd.f32 %v781, %v850
        %v883 = vadd.f32 %v782, %v851
        %v884 = vadd.f32 %v783, %v852
        %v885 = vadd.f32 %v784, %v853
        %v886 = vadd.f32 %v785, %v854
        %v887 = vadd.f32 %v786, %v855
        %v888 = vadd.f32 %v787, %v856
        %v889 = vadd.f32 %v788, %v857
        %v890 = vadd.f32 %v789, %v858
        %v891 = vadd.f32 %v790, %v859
        %v892 = vadd.f32 %v791, %v860
        %v893 = vadd.f32 %v792, %v861
        %v894 = vadd.f32 %v793, %v862
        %v895 = vadd.f32 %v794, %v863
        %v896 = vld [vmem:[%s795 + $0x1] sm:$0xff]
        %v897 = vld [vmem:[%s795 + $0x9] sm:$0xff]
        %v898 = vld [vmem:[%s795 + $0x19] sm:$0xff]
        %v899 = vld [vmem:[%s795 + $0x21] sm:$0xff]
        %v900 = vld [vmem:[%s795 + $0x31] sm:$0xff]
        %v901 = vld [vmem:[%s795 + $0x39] sm:$0xff]
        %v902 = vld [vmem:[%s795 + $0x49] sm:$0xff]
        %v903 = vld [vmem:[%s795 + $0x51] sm:$0xff]
        %v904 = vld [vmem:[%s795 + $0x61] sm:$0xff]
        %v905 = vld [vmem:[%s795 + $0x69] sm:$0xff]
        %v906 = vld [vmem:[%s795 + $0x79] sm:$0xff]
        %v907 = vld [vmem:[%s795 + $0x81] sm:$0xff]
        %v908 = vld [vmem:[%s795 + $0x91] sm:$0xff]
        %v909 = vld [vmem:[%s795 + $0x99] sm:$0xff]
        %v910 = vld [vmem:[%s795 + $0xa9] sm:$0xff]
        %v911 = vld [vmem:[%s795 + $0xb1] sm:$0xff]
        %v912 = vld [vmem:[%s795 + $0xc1] sm:$0xff]
        %v913 = vld [vmem:[%s795 + $0xc9] sm:$0xff]
        %v914 = vld [vmem:[%s795 + $0xd9] sm:$0xff]
        %v915 = vld [vmem:[%s795 + $0xe1] sm:$0xff]
        %v916 = vld [vmem:[%s795 + $0xf1] sm:$0xff]
        %v917 = vld [vmem:[%s795 + $0xf9] sm:$0xff]
        %v918 = vld [vmem:[%s795 + $0x109] sm:$0xff]
        %v919 = vld [vmem:[%s795 + $0x111] sm:$0xff]
        %v920 = vld [vmem:[%s795 + $0x121] sm:$0xff]
        %v921 = vld [vmem:[%s795 + $0x129] sm:$0xff]
        %v922 = vld [vmem:[%s795 + $0x139] sm:$0xff]
        %v923 = vld [vmem:[%s795 + $0x141] sm:$0xff]
        %v924 = vld [vmem:[%s795 + $0x151] sm:$0xff]
        %v925 = vld [vmem:[%s795 + $0x159] sm:$0xff]
        %v926 = vld [vmem:[%s795 + $0x169] sm:$0xff]
        %v927 = vld [vmem:[%s795 + $0x171] sm:$0xff]
        %v928 = vlaneseq
        %v929 = vshrl.u32 %v928, 7
        %v930 = vsub.s32 7, %v929
        %v931 = vrot.slane %v224, %v930
        %v932 = vmul.f32 %v896, %v931
        %v933 = vmul.f32 %v897, %v931
        %v934 = vmul.f32 %v898, %v931
        %v935 = vmul.f32 %v899, %v931
        %v936 = vmul.f32 %v900, %v931
        %v937 = vmul.f32 %v901, %v931
        %v938 = vmul.f32 %v902, %v931
        %v939 = vmul.f32 %v903, %v931
        %v940 = vmul.f32 %v904, %v931
        %v941 = vmul.f32 %v905, %v931
        %v942 = vmul.f32 %v906, %v931
        %v943 = vmul.f32 %v907, %v931
        %v944 = vmul.f32 %v908, %v931
        %v945 = vmul.f32 %v909, %v931
        %v946 = vmul.f32 %v910, %v931
        %v947 = vmul.f32 %v911, %v931
        %v948 = vmul.f32 %v912, %v931
        %v949 = vmul.f32 %v913, %v931
        %v950 = vmul.f32 %v914, %v931
        %v951 = vmul.f32 %v915, %v931
        %v952 = vmul.f32 %v916, %v931
        %v953 = vmul.f32 %v917, %v931
        %v954 = vmul.f32 %v918, %v931
        %v955 = vmul.f32 %v919, %v931
        %v956 = vmul.f32 %v920, %v931
        %v957 = vmul.f32 %v921, %v931
        %v958 = vmul.f32 %v922, %v931
        %v959 = vmul.f32 %v923, %v931
        %v960 = vmul.f32 %v924, %v931
        %v961 = vmul.f32 %v925, %v931
        %v962 = vmul.f32 %v926, %v931
        %v963 = vmul.f32 %v927, %v931
        %v964 = vadd.f32 %v864, %v932
        %v965 = vadd.f32 %v865, %v933
        %v966 = vadd.f32 %v866, %v934
        %v967 = vadd.f32 %v867, %v935
        %v968 = vadd.f32 %v868, %v936
        %v969 = vadd.f32 %v869, %v937
        %v970 = vadd.f32 %v870, %v938
        %v971 = vadd.f32 %v871, %v939
        %v972 = vadd.f32 %v872, %v940
        %v973 = vadd.f32 %v873, %v941
        %v974 = vadd.f32 %v874, %v942
        %v975 = vadd.f32 %v875, %v943
        %v976 = vadd.f32 %v876, %v944
        %v977 = vadd.f32 %v877, %v945
        %v978 = vadd.f32 %v878, %v946
        %v979 = vadd.f32 %v879, %v947
        %v980 = vadd.f32 %v880, %v948
        %v981 = vadd.f32 %v881, %v949
        %v982 = vadd.f32 %v882, %v950
        %v983 = vadd.f32 %v883, %v951
        %v984 = vadd.f32 %v884, %v952
        %v985 = vadd.f32 %v885, %v953
        %v986 = vadd.f32 %v886, %v954
        %v987 = vadd.f32 %v887, %v955
        %v988 = vadd.f32 %v888, %v956
        %v989 = vadd.f32 %v889, %v957
        %v990 = vadd.f32 %v890, %v958
        %v991 = vadd.f32 %v891, %v959
        %v992 = vadd.f32 %v892, %v960
        %v993 = vadd.f32 %v893, %v961
        %v994 = vadd.f32 %v894, %v962
        %v995 = vadd.f32 %v895, %v963
        %v996 = vld [vmem:[%s795 + $0x2] sm:$0xff]
        %v997 = vld [vmem:[%s795 + $0xa] sm:$0xff]
        %v998 = vld [vmem:[%s795 + $0x1a] sm:$0xff]
        %v999 = vld [vmem:[%s795 + $0x22] sm:$0xff]
        %v1000 = vld [vmem:[%s795 + $0x32] sm:$0xff]
        %v1001 = vld [vmem:[%s795 + $0x3a] sm:$0xff]
        %v1002 = vld [vmem:[%s795 + $0x4a] sm:$0xff]
        %v1003 = vld [vmem:[%s795 + $0x52] sm:$0xff]
        %v1004 = vld [vmem:[%s795 + $0x62] sm:$0xff]
        %v1005 = vld [vmem:[%s795 + $0x6a] sm:$0xff]
        %v1006 = vld [vmem:[%s795 + $0x7a] sm:$0xff]
        %v1007 = vld [vmem:[%s795 + $0x82] sm:$0xff]
        %v1008 = vld [vmem:[%s795 + $0x92] sm:$0xff]
        %v1009 = vld [vmem:[%s795 + $0x9a] sm:$0xff]
        %v1010 = vld [vmem:[%s795 + $0xaa] sm:$0xff]
        %v1011 = vld [vmem:[%s795 + $0xb2] sm:$0xff]
        %v1012 = vld [vmem:[%s795 + $0xc2] sm:$0xff]
        %v1013 = vld [vmem:[%s795 + $0xca] sm:$0xff]
        %v1014 = vld [vmem:[%s795 + $0xda] sm:$0xff]
        %v1015 = vld [vmem:[%s795 + $0xe2] sm:$0xff]
        %v1016 = vld [vmem:[%s795 + $0xf2] sm:$0xff]
        %v1017 = vld [vmem:[%s795 + $0xfa] sm:$0xff]
        %v1018 = vld [vmem:[%s795 + $0x10a] sm:$0xff]
        %v1019 = vld [vmem:[%s795 + $0x112] sm:$0xff]
        %v1020 = vld [vmem:[%s795 + $0x122] sm:$0xff]
        %v1021 = vld [vmem:[%s795 + $0x12a] sm:$0xff]
        %v1022 = vld [vmem:[%s795 + $0x13a] sm:$0xff]
        %v1023 = vld [vmem:[%s795 + $0x142] sm:$0xff]
        %v1024 = vld [vmem:[%s795 + $0x152] sm:$0xff]
        %v1025 = vld [vmem:[%s795 + $0x15a] sm:$0xff]
        %v1026 = vld [vmem:[%s795 + $0x16a] sm:$0xff]
        %v1027 = vld [vmem:[%s795 + $0x172] sm:$0xff]
        %v1028 = vlaneseq
        %v1029 = vshrl.u32 %v1028, 7
        %v1030 = vsub.s32 0, %v1029
        %v1031 = vrot.slane %v225, %v1030
        %v1032 = vmul.f32 %v996, %v1031
        %v1033 = vmul.f32 %v997, %v1031
        %v1034 = vmul.f32 %v998, %v1031
        %v1035 = vmul.f32 %v999, %v1031
        %v1036 = vmul.f32 %v1000, %v1031
        %v1037 = vmul.f32 %v1001, %v1031
        %v1038 = vmul.f32 %v1002, %v1031
        %v1039 = vmul.f32 %v1003, %v1031
        %v1040 = vmul.f32 %v1004, %v1031
        %v1041 = vmul.f32 %v1005, %v1031
        %v1042 = vmul.f32 %v1006, %v1031
        %v1043 = vmul.f32 %v1007, %v1031
        %v1044 = vmul.f32 %v1008, %v1031
        %v1045 = vmul.f32 %v1009, %v1031
        %v1046 = vmul.f32 %v1010, %v1031
        %v1047 = vmul.f32 %v1011, %v1031
        %v1048 = vmul.f32 %v1012, %v1031
        %v1049 = vmul.f32 %v1013, %v1031
        %v1050 = vmul.f32 %v1014, %v1031
        %v1051 = vmul.f32 %v1015, %v1031
        %v1052 = vmul.f32 %v1016, %v1031
        %v1053 = vmul.f32 %v1017, %v1031
        %v1054 = vmul.f32 %v1018, %v1031
        %v1055 = vmul.f32 %v1019, %v1031
        %v1056 = vmul.f32 %v1020, %v1031
        %v1057 = vmul.f32 %v1021, %v1031
        %v1058 = vmul.f32 %v1022, %v1031
        %v1059 = vmul.f32 %v1023, %v1031
        %v1060 = vmul.f32 %v1024, %v1031
        %v1061 = vmul.f32 %v1025, %v1031
        %v1062 = vmul.f32 %v1026, %v1031
        %v1063 = vmul.f32 %v1027, %v1031
        %v1064 = vadd.f32 %v964, %v1032
        %v1065 = vadd.f32 %v965, %v1033
        %v1066 = vadd.f32 %v966, %v1034
        %v1067 = vadd.f32 %v967, %v1035
        %v1068 = vadd.f32 %v968, %v1036
        %v1069 = vadd.f32 %v969, %v1037
        %v1070 = vadd.f32 %v970, %v1038
        %v1071 = vadd.f32 %v971, %v1039
        %v1072 = vadd.f32 %v972, %v1040
        %v1073 = vadd.f32 %v973, %v1041
        %v1074 = vadd.f32 %v974, %v1042
        %v1075 = vadd.f32 %v975, %v1043
        %v1076 = vadd.f32 %v976, %v1044
        %v1077 = vadd.f32 %v977, %v1045
        %v1078 = vadd.f32 %v978, %v1046
        %v1079 = vadd.f32 %v979, %v1047
        %v1080 = vadd.f32 %v980, %v1048
        %v1081 = vadd.f32 %v981, %v1049
        %v1082 = vadd.f32 %v982, %v1050
        %v1083 = vadd.f32 %v983, %v1051
        %v1084 = vadd.f32 %v984, %v1052
        %v1085 = vadd.f32 %v985, %v1053
        %v1086 = vadd.f32 %v986, %v1054
        %v1087 = vadd.f32 %v987, %v1055
        %v1088 = vadd.f32 %v988, %v1056
        %v1089 = vadd.f32 %v989, %v1057
        %v1090 = vadd.f32 %v990, %v1058
        %v1091 = vadd.f32 %v991, %v1059
        %v1092 = vadd.f32 %v992, %v1060
        %v1093 = vadd.f32 %v993, %v1061
        %v1094 = vadd.f32 %v994, %v1062
        %v1095 = vadd.f32 %v995, %v1063
        %v1096 = vpack.c.bf16 %v1065, %v1064
        %v1097 = vpack.c.bf16 %v1067, %v1066
        %v1098 = vpack.c.bf16 %v1069, %v1068
        %v1099 = vpack.c.bf16 %v1071, %v1070
        %v1100 = vpack.c.bf16 %v1073, %v1072
        %v1101 = vpack.c.bf16 %v1075, %v1074
        %v1102 = vpack.c.bf16 %v1077, %v1076
        %v1103 = vpack.c.bf16 %v1079, %v1078
        %v1104 = vpack.c.bf16 %v1081, %v1080
        %v1105 = vpack.c.bf16 %v1083, %v1082
        %v1106 = vpack.c.bf16 %v1085, %v1084
        %v1107 = vpack.c.bf16 %v1087, %v1086
        %v1108 = vpack.c.bf16 %v1089, %v1088
        %v1109 = vpack.c.bf16 %v1091, %v1090
        %v1110 = vpack.c.bf16 %v1093, %v1092
        %v1111 = vpack.c.bf16 %v1095, %v1094
        %v1112 = vld [vmem:[%s2] sm:$0xf]
        %v1113 = vld [vmem:[%s2 + $0x4] sm:$0xf]
        %v1116 = vunpack.c.l.b16 %v1112
        %v1117 = vunpack.c.l.b16 %v1113
        %v1118 = vpack.c.b16 %v1117, %v1116
        %vm1120 = vcmask 130048
        %v1122 = vsel %vm1120, %v1096, 0
        %v1125 = vsel %vm1120, %v1097, 0
        %v1128 = vsel %vm1120, %v1098, 0
        %v1131 = vsel %vm1120, %v1099, 0
        %v1134 = vsel %vm1120, %v1100, 0
        %v1137 = vsel %vm1120, %v1101, 0
        %v1140 = vsel %vm1120, %v1102, 0
        %v1143 = vsel %vm1120, %v1103, 0
        %v1146 = vsel %vm1120, %v1104, 0
        %v1149 = vsel %vm1120, %v1105, 0
        %v1152 = vsel %vm1120, %v1106, 0
        %v1155 = vsel %vm1120, %v1107, 0
        %v1158 = vsel %vm1120, %v1108, 0
        %v1161 = vsel %vm1120, %v1109, 0
        %v1164 = vsel %vm1120, %v1110, 0
        %v1167 = vsel %vm1120, %v1111, 0
        %1169 = vmatprep.subr.bf16.mxu0 0
        %1170 = vmatpush1.bf16.msra.mxu0 0
        %1171 = vmatprep.subr.bf16.mxu0 0
        %1172 = vmatpush1.bf16.msra.mxu0 0
        %1173 = vmatprep.subr.bf16.mxu0 0
        %1174 = vmatpush1.bf16.msra.mxu0 0
        %1175 = vmatprep.subr.bf16.mxu0 0
        %1176 = vmatpush1.bf16.msra.mxu0 0
        %1177 = vmatprep.subr.bf16.mxu0 0
        %1178 = vmatpush1.bf16.msra.mxu0 0
        %1179 = vmatprep.subr.bf16.mxu0 0
        %1180 = vmatpush1.bf16.msra.mxu0 0
        %1181 = vmatprep.subr.bf16.mxu0 0
        %1182 = vmatpush1.bf16.msra.mxu0 0
        %1183 = vmatprep.subr.bf16.mxu0 0
        %1184 = vmatpush1.bf16.msra.mxu0 %v1118
        %1185 = vmatprep.subr.bf16.mxu0 0
        %1186 = vmatpush2.bf16.msra.mxu0 0
        %1187 = vmatprep.subr.bf16.mxu0 0
        %1188 = vmatpush2.bf16.msra.mxu0 0
        %1189 = vmatprep.subr.bf16.mxu0 0
        %1190 = vmatpush2.bf16.msra.mxu0 0
        %1191 = vmatprep.subr.bf16.mxu0 0
        %1192 = vmatpush2.bf16.msra.mxu0 0
        %1193 = vmatprep.subr.bf16.mxu0 0
        %1194 = vmatpush2.bf16.msra.mxu0 0
        %1195 = vmatprep.subr.bf16.mxu0 0
        %1196 = vmatpush2.bf16.msra.mxu0 0
        %1197 = vmatprep.subr.bf16.mxu0 0
        %1198 = vmatpush2.bf16.msra.mxu0 0
        %1199 = vmatprep.subr.bf16.mxu0 0
        %1200 = vmatpush2.bf16.msra.mxu0 0
        %1201 = vmatprep.mubr.bf16.mxu0 0
        %1202 = vmatmul.mubr.bf16.gmra.mxu0 %v1122
        %v1203 = vpop.f32.mrf.mxu0
        %v1204 = vadd.f32 0.0, %v1203
        %v1205 = vpop.f32.mrf.mxu0
        %v1206 = vpop.f32.mrf.mxu0
        %v1207 = vadd.f32 0.0, %v1206
        %v1208 = vpop.f32.mrf.mxu0
        %1209 = vmatprep.mubr.bf16.mxu0 0
        %1210 = vmatmul.mubr.bf16.gmra.mxu0 %v1125
        %v1211 = vpop.f32.mrf.mxu0
        %v1212 = vadd.f32 0.0, %v1211
        %v1213 = vpop.f32.mrf.mxu0
        %v1214 = vpop.f32.mrf.mxu0
        %v1215 = vadd.f32 0.0, %v1214
        %v1216 = vpop.f32.mrf.mxu0
        %1217 = vmatprep.mubr.bf16.mxu0 0
        %1218 = vmatmul.mubr.bf16.gmra.mxu0 %v1128
        %v1219 = vpop.f32.mrf.mxu0
        %v1220 = vadd.f32 0.0, %v1219
        %v1221 = vpop.f32.mrf.mxu0
        %v1222 = vpop.f32.mrf.mxu0
        %v1223 = vadd.f32 0.0, %v1222
        %v1224 = vpop.f32.mrf.mxu0
        %1225 = vmatprep.mubr.bf16.mxu0 0
        %1226 = vmatmul.mubr.bf16.gmra.mxu0 %v1131
        %v1227 = vpop.f32.mrf.mxu0
        %v1228 = vadd.f32 0.0, %v1227
        %v1229 = vpop.f32.mrf.mxu0
        %v1230 = vpop.f32.mrf.mxu0
        %v1231 = vadd.f32 0.0, %v1230
        %v1232 = vpop.f32.mrf.mxu0
        %1233 = vmatprep.mubr.bf16.mxu0 0
        %1234 = vmatmul.mubr.bf16.gmra.mxu0 %v1134
        %v1235 = vpop.f32.mrf.mxu0
        %v1236 = vadd.f32 0.0, %v1235
        %v1237 = vpop.f32.mrf.mxu0
        %v1238 = vpop.f32.mrf.mxu0
        %v1239 = vadd.f32 0.0, %v1238
        %v1240 = vpop.f32.mrf.mxu0
        %1241 = vmatprep.mubr.bf16.mxu0 0
        %1242 = vmatmul.mubr.bf16.gmra.mxu0 %v1137
        %v1243 = vpop.f32.mrf.mxu0
        %v1244 = vadd.f32 0.0, %v1243
        %v1245 = vpop.f32.mrf.mxu0
        %v1246 = vpop.f32.mrf.mxu0
        %v1247 = vadd.f32 0.0, %v1246
        %v1248 = vpop.f32.mrf.mxu0
        %1249 = vmatprep.mubr.bf16.mxu0 0
        %1250 = vmatmul.mubr.bf16.gmra.mxu0 %v1140
        %v1251 = vpop.f32.mrf.mxu0
        %v1252 = vadd.f32 0.0, %v1251
        %v1253 = vpop.f32.mrf.mxu0
        %v1254 = vpop.f32.mrf.mxu0
        %v1255 = vadd.f32 0.0, %v1254
        %v1256 = vpop.f32.mrf.mxu0
        %1257 = vmatprep.mubr.bf16.mxu0 0
        %1258 = vmatmul.mubr.bf16.gmra.mxu0 %v1143
        %v1259 = vpop.f32.mrf.mxu0
        %v1260 = vadd.f32 0.0, %v1259
        %v1261 = vpop.f32.mrf.mxu0
        %v1262 = vpop.f32.mrf.mxu0
        %v1263 = vadd.f32 0.0, %v1262
        %v1264 = vpop.f32.mrf.mxu0
        %1265 = vmatprep.mubr.bf16.mxu0 0
        %1266 = vmatmul.mubr.bf16.gmra.mxu0 %v1146
        %v1267 = vpop.f32.mrf.mxu0
        %v1268 = vadd.f32 0.0, %v1267
        %v1269 = vpop.f32.mrf.mxu0
        %v1270 = vpop.f32.mrf.mxu0
        %v1271 = vadd.f32 0.0, %v1270
        %v1272 = vpop.f32.mrf.mxu0
        %1273 = vmatprep.mubr.bf16.mxu0 0
        %1274 = vmatmul.mubr.bf16.gmra.mxu0 %v1149
        %v1275 = vpop.f32.mrf.mxu0
        %v1276 = vadd.f32 0.0, %v1275
        %v1277 = vpop.f32.mrf.mxu0
        %v1278 = vpop.f32.mrf.mxu0
        %v1279 = vadd.f32 0.0, %v1278
        %v1280 = vpop.f32.mrf.mxu0
        %1281 = vmatprep.mubr.bf16.mxu0 0
        %1282 = vmatmul.mubr.bf16.gmra.mxu0 %v1152
        %v1283 = vpop.f32.mrf.mxu0
        %v1284 = vadd.f32 0.0, %v1283
        %v1285 = vpop.f32.mrf.mxu0
        %v1286 = vpop.f32.mrf.mxu0
        %v1287 = vadd.f32 0.0, %v1286
        %v1288 = vpop.f32.mrf.mxu0
        %1289 = vmatprep.mubr.bf16.mxu0 0
        %1290 = vmatmul.mubr.bf16.gmra.mxu0 %v1155
        %v1291 = vpop.f32.mrf.mxu0
        %v1292 = vadd.f32 0.0, %v1291
        %v1293 = vpop.f32.mrf.mxu0
        %v1294 = vpop.f32.mrf.mxu0
        %v1295 = vadd.f32 0.0, %v1294
        %v1296 = vpop.f32.mrf.mxu0
        %1297 = vmatprep.mubr.bf16.mxu0 0
        %1298 = vmatmul.mubr.bf16.gmra.mxu0 %v1158
        %v1299 = vpop.f32.mrf.mxu0
        %v1300 = vadd.f32 0.0, %v1299
        %v1301 = vpop.f32.mrf.mxu0
        %v1302 = vpop.f32.mrf.mxu0
        %v1303 = vadd.f32 0.0, %v1302
        %v1304 = vpop.f32.mrf.mxu0
        %1305 = vmatprep.mubr.bf16.mxu0 0
        %1306 = vmatmul.mubr.bf16.gmra.mxu0 %v1161
        %v1307 = vpop.f32.mrf.mxu0
        %v1308 = vadd.f32 0.0, %v1307
        %v1309 = vpop.f32.mrf.mxu0
        %v1310 = vpop.f32.mrf.mxu0
        %v1311 = vadd.f32 0.0, %v1310
        %v1312 = vpop.f32.mrf.mxu0
        %1313 = vmatprep.mubr.bf16.mxu0 0
        %1314 = vmatmul.mubr.bf16.gmra.mxu0 %v1164
        %v1315 = vpop.f32.mrf.mxu0
        %v1316 = vadd.f32 0.0, %v1315
        %v1317 = vpop.f32.mrf.mxu0
        %v1318 = vpop.f32.mrf.mxu0
        %v1319 = vadd.f32 0.0, %v1318
        %v1320 = vpop.f32.mrf.mxu0
        %1321 = vmatprep.mubr.bf16.mxu0 0
        %1322 = vmatmul.mubr.bf16.gmra.mxu0 %v1167
        %v1323 = vpop.f32.mrf.mxu0
        %v1324 = vadd.f32 0.0, %v1323
        %v1325 = vpop.f32.mrf.mxu0
        %v1326 = vpop.f32.mrf.mxu0
        %v1327 = vadd.f32 0.0, %v1326
        %v1328 = vpop.f32.mrf.mxu0
        %1329 = vdwg.mxu0
        %v1330 = vld [vmem:[%s3] sm:$0x1]
        %v1332 = vlaneseq
        %v1333 = vshrl.u32 %v1332, 7
        %v1334 = vsub.s32 0, %v1333
        %v1335 = vrot.slane %v1330, %v1334
        %v1337 = vmul.f32 %v1204, %v1335
        %v1338 = vmul.f32 %v1207, %v1335
        %v1339 = vmul.f32 %v1212, %v1335
        %v1340 = vmul.f32 %v1215, %v1335
        %v1341 = vmul.f32 %v1220, %v1335
        %v1342 = vmul.f32 %v1223, %v1335
        %v1343 = vmul.f32 %v1228, %v1335
        %v1344 = vmul.f32 %v1231, %v1335
        %v1345 = vmul.f32 %v1236, %v1335
        %v1346 = vmul.f32 %v1239, %v1335
        %v1347 = vmul.f32 %v1244, %v1335
        %v1348 = vmul.f32 %v1247, %v1335
        %v1349 = vmul.f32 %v1252, %v1335
        %v1350 = vmul.f32 %v1255, %v1335
        %v1351 = vmul.f32 %v1260, %v1335
        %v1352 = vmul.f32 %v1263, %v1335
        %v1353 = vmul.f32 %v1268, %v1335
        %v1354 = vmul.f32 %v1271, %v1335
        %v1355 = vmul.f32 %v1276, %v1335
        %v1356 = vmul.f32 %v1279, %v1335
        %v1357 = vmul.f32 %v1284, %v1335
        %v1358 = vmul.f32 %v1287, %v1335
        %v1359 = vmul.f32 %v1292, %v1335
        %v1360 = vmul.f32 %v1295, %v1335
        %v1361 = vmul.f32 %v1300, %v1335
        %v1362 = vmul.f32 %v1303, %v1335
        %v1363 = vmul.f32 %v1308, %v1335
        %v1364 = vmul.f32 %v1311, %v1335
        %v1365 = vmul.f32 %v1316, %v1335
        %v1366 = vmul.f32 %v1319, %v1335
        %v1367 = vmul.f32 %v1324, %v1335
        %v1368 = vmul.f32 %v1327, %v1335
        %v1369 = vld [vmem:[%s4] sm:$0x1]
        %v1371 = vlaneseq
        %v1372 = vshrl.u32 %v1371, 7
        %v1373 = vsub.s32 0, %v1372
        %v1374 = vrot.slane %v1369, %v1373
        %v1376 = vadd.f32 %v1337, %v1374
        %v1377 = vadd.f32 %v1338, %v1374
        %v1378 = vadd.f32 %v1339, %v1374
        %v1379 = vadd.f32 %v1340, %v1374
        %v1380 = vadd.f32 %v1341, %v1374
        %v1381 = vadd.f32 %v1342, %v1374
        %v1382 = vadd.f32 %v1343, %v1374
        %v1383 = vadd.f32 %v1344, %v1374
        %v1384 = vadd.f32 %v1345, %v1374
        %v1385 = vadd.f32 %v1346, %v1374
        %v1386 = vadd.f32 %v1347, %v1374
        %v1387 = vadd.f32 %v1348, %v1374
        %v1388 = vadd.f32 %v1349, %v1374
        %v1389 = vadd.f32 %v1350, %v1374
        %v1390 = vadd.f32 %v1351, %v1374
        %v1391 = vadd.f32 %v1352, %v1374
        %v1392 = vadd.f32 %v1353, %v1374
        %v1393 = vadd.f32 %v1354, %v1374
        %v1394 = vadd.f32 %v1355, %v1374
        %v1395 = vadd.f32 %v1356, %v1374
        %v1396 = vadd.f32 %v1357, %v1374
        %v1397 = vadd.f32 %v1358, %v1374
        %v1398 = vadd.f32 %v1359, %v1374
        %v1399 = vadd.f32 %v1360, %v1374
        %v1400 = vadd.f32 %v1361, %v1374
        %v1401 = vadd.f32 %v1362, %v1374
        %v1402 = vadd.f32 %v1363, %v1374
        %v1403 = vadd.f32 %v1364, %v1374
        %v1404 = vadd.f32 %v1365, %v1374
        %v1405 = vadd.f32 %v1366, %v1374
        %v1406 = vadd.f32 %v1367, %v1374
        %v1407 = vadd.f32 %v1368, %v1374
        %v1408 = vmax.f32 %v1376, 0.0
        %v1409 = vmax.f32 %v1377, 0.0
        %v1410 = vmax.f32 %v1378, 0.0
        %v1411 = vmax.f32 %v1379, 0.0
        %v1412 = vmax.f32 %v1380, 0.0
        %v1413 = vmax.f32 %v1381, 0.0
        %v1414 = vmax.f32 %v1382, 0.0
        %v1415 = vmax.f32 %v1383, 0.0
        %v1416 = vmax.f32 %v1384, 0.0
        %v1417 = vmax.f32 %v1385, 0.0
        %v1418 = vmax.f32 %v1386, 0.0
        %v1419 = vmax.f32 %v1387, 0.0
        %v1420 = vmax.f32 %v1388, 0.0
        %v1421 = vmax.f32 %v1389, 0.0
        %v1422 = vmax.f32 %v1390, 0.0
        %v1423 = vmax.f32 %v1391, 0.0
        %v1424 = vmax.f32 %v1392, 0.0
        %v1425 = vmax.f32 %v1393, 0.0
        %v1426 = vmax.f32 %v1394, 0.0
        %v1427 = vmax.f32 %v1395, 0.0
        %v1428 = vmax.f32 %v1396, 0.0
        %v1429 = vmax.f32 %v1397, 0.0
        %v1430 = vmax.f32 %v1398, 0.0
        %v1431 = vmax.f32 %v1399, 0.0
        %v1432 = vmax.f32 %v1400, 0.0
        %v1433 = vmax.f32 %v1401, 0.0
        %v1434 = vmax.f32 %v1402, 0.0
        %v1435 = vmax.f32 %v1403, 0.0
        %v1436 = vmax.f32 %v1404, 0.0
        %v1437 = vmax.f32 %v1405, 0.0
        %v1438 = vmax.f32 %v1406, 0.0
        %v1439 = vmax.f32 %v1407, 0.0
        %v1440 = vmin.f32 %v1408, 6.0
        %v1441 = vmin.f32 %v1409, 6.0
        %v1442 = vmin.f32 %v1410, 6.0
        %v1443 = vmin.f32 %v1411, 6.0
        %v1444 = vmin.f32 %v1412, 6.0
        %v1445 = vmin.f32 %v1413, 6.0
        %v1446 = vmin.f32 %v1414, 6.0
        %v1447 = vmin.f32 %v1415, 6.0
        %v1448 = vmin.f32 %v1416, 6.0
        %v1449 = vmin.f32 %v1417, 6.0
        %v1450 = vmin.f32 %v1418, 6.0
        %v1451 = vmin.f32 %v1419, 6.0
        %v1452 = vmin.f32 %v1420, 6.0
        %v1453 = vmin.f32 %v1421, 6.0
        %v1454 = vmin.f32 %v1422, 6.0
        %v1455 = vmin.f32 %v1423, 6.0
        %v1456 = vmin.f32 %v1424, 6.0
        %v1457 = vmin.f32 %v1425, 6.0
        %v1458 = vmin.f32 %v1426, 6.0
        %v1459 = vmin.f32 %v1427, 6.0
        %v1460 = vmin.f32 %v1428, 6.0
        %v1461 = vmin.f32 %v1429, 6.0
        %v1462 = vmin.f32 %v1430, 6.0
        %v1463 = vmin.f32 %v1431, 6.0
        %v1464 = vmin.f32 %v1432, 6.0
        %v1465 = vmin.f32 %v1433, 6.0
        %v1466 = vmin.f32 %v1434, 6.0
        %v1467 = vmin.f32 %v1435, 6.0
        %v1468 = vmin.f32 %v1436, 6.0
        %v1469 = vmin.f32 %v1437, 6.0
        %v1470 = vmin.f32 %v1438, 6.0
        %v1471 = vmin.f32 %v1439, 6.0
        %vm1472 = vcmask 261120
        %1473 = vst.msk [vmem:[%s217] sm:$0xff] %vm1472, %v1440
        %1474 = vst.msk [vmem:[%s217 + $0x8] sm:$0xff] %vm1472, %v1441
        %1475 = vst.msk [vmem:[%s217 + $0x10] sm:$0xff] %vm1472, %v1442
        %1476 = vst.msk [vmem:[%s217 + $0x18] sm:$0xff] %vm1472, %v1443
        %1477 = vst.msk [vmem:[%s217 + $0x20] sm:$0xff] %vm1472, %v1444
        %1478 = vst.msk [vmem:[%s217 + $0x28] sm:$0xff] %vm1472, %v1445
        %1479 = vst.msk [vmem:[%s217 + $0x30] sm:$0xff] %vm1472, %v1446
        %1480 = vst.msk [vmem:[%s217 + $0x38] sm:$0xff] %vm1472, %v1447
        %1481 = vst.msk [vmem:[%s217 + $0x40] sm:$0xff] %vm1472, %v1448
        %1482 = vst.msk [vmem:[%s217 + $0x48] sm:$0xff] %vm1472, %v1449
        %1483 = vst.msk [vmem:[%s217 + $0x50] sm:$0xff] %vm1472, %v1450
        %1484 = vst.msk [vmem:[%s217 + $0x58] sm:$0xff] %vm1472, %v1451
        %1485 = vst.msk [vmem:[%s217 + $0x60] sm:$0xff] %vm1472, %v1452
        %1486 = vst.msk [vmem:[%s217 + $0x68] sm:$0xff] %vm1472, %v1453
        %1487 = vst.msk [vmem:[%s217 + $0x70] sm:$0xff] %vm1472, %v1454
        %1488 = vst.msk [vmem:[%s217 + $0x78] sm:$0xff] %vm1472, %v1455
        %1489 = vst.msk [vmem:[%s217 + $0x80] sm:$0xff] %vm1472, %v1456
        %1490 = vst.msk [vmem:[%s217 + $0x88] sm:$0xff] %vm1472, %v1457
        %1491 = vst.msk [vmem:[%s217 + $0x90] sm:$0xff] %vm1472, %v1458
        %1492 = vst.msk [vmem:[%s217 + $0x98] sm:$0xff] %vm1472, %v1459
        %1493 = vst.msk [vmem:[%s217 + $0xa0] sm:$0xff] %vm1472, %v1460
        %1494 = vst.msk [vmem:[%s217 + $0xa8] sm:$0xff] %vm1472, %v1461
        %1495 = vst.msk [vmem:[%s217 + $0xb0] sm:$0xff] %vm1472, %v1462
        %1496 = vst.msk [vmem:[%s217 + $0xb8] sm:$0xff] %vm1472, %v1463
        %1497 = vst.msk [vmem:[%s217 + $0xc0] sm:$0xff] %vm1472, %v1464
        %1498 = vst.msk [vmem:[%s217 + $0xc8] sm:$0xff] %vm1472, %v1465
        %1499 = vst.msk [vmem:[%s217 + $0xd0] sm:$0xff] %vm1472, %v1466
        %1500 = vst.msk [vmem:[%s217 + $0xd8] sm:$0xff] %vm1472, %v1467
        %1501 = vst.msk [vmem:[%s217 + $0xe0] sm:$0xff] %vm1472, %v1468
        %1502 = vst.msk [vmem:[%s217 + $0xe8] sm:$0xff] %vm1472, %v1469
        %1503 = vst.msk [vmem:[%s217 + $0xf0] sm:$0xff] %vm1472, %v1470
        %1504 = vst.msk [vmem:[%s217 + $0xf8] sm:$0xff] %vm1472, %v1471
        %s1505 = sand.u32 %s137, 1
        %s1506 = scalar_lea.sflag [#allocation3], %s1505
        %s1507 = sand.u32 %s137, 1
        %s1508 = smul.addr %s1507, 256
        %s1509 = scalar_lea.vmem [#allocation2], %s1508
        // Predicated region
        $region41: #{dwsep_forward.1} parent=39 // pred_check
          %p1510 = pneg %p147
        $region42: #{dwsep_forward.1} parent=39 // pred_check_branch
          %1512 = sbr.rel (%p1510) target = $region44
        $region43: #{dwsep_forward.1} parent=39 // pred_region
          %s1514 = ssub.s32 4096, 4096
          %1515 = vsyncadd %s1506, %s1514
          %s1516 = smul.addr %s19, 32
          %s1517 = smul.addr %s1516, 128
          %s1518 = scalar_lea.hbm %s5, %s1517
          %s1519 = sshll.u32 %s1509, 4
          %s1520 = int_to_ptr.vmem [resolvable:$true] %s1519
          %1525 = dma.vmem_to_hbm [thread:$0]  %s1520, 4096, %s1518, %s1506, 128, 128, 8
        $region44: #{dwsep_forward.1} parent=39 // pred_fallthru
          _
      $region40: #{dwsep_forward.1} parent=5 // pred_fallthru
        _
      %p1526 = scmp.le.s32.totalorder 2, %s14
      // Predicated region
      $region45: #{dwsep_forward.1} parent=5 // pred_check
        %p1527 = pneg %p1526
      $region46: #{dwsep_forward.1} parent=5 // pred_check_branch
        %1529 = sbr.rel (%p1527) target = $region48
      $region47: #{dwsep_forward.1} parent=5 // pred_region
        %s1530 = ssub.s32 %s14, 2
        // Predicated region
        $region49: #{dwsep_forward.1} parent=47 // pred_check
          %p1531 = pneg %p153
        $region50: #{dwsep_forward.1} parent=47 // pred_check_branch
          %1533 = sbr.rel (%p1531) target = $region52
        $region51: #{dwsep_forward.1} parent=47 // pred_region
          %s1534 = sand.u32 %s138, 1
          %s1535 = scalar_lea.sflag [#allocation3], %s1534
          %s1536 = sand.u32 %s138, 1
          %s1537 = smul.addr %s1536, 256
          %s1538 = scalar_lea.vmem [#allocation2], %s1537
          %1539 = dma.done %s1535, 4096
        $region52: #{dwsep_forward.1} parent=47 // pred_fallthru
          _
      $region48: #{dwsep_forward.1} parent=5 // pred_fallthru
        _
    $region6: #{dwsep_forward.1} parent=1 // loop_footer
      %s18 = sadd.s32 1, %s14
    $region7: #{dwsep_forward.1} parent=1 // loop_footer_branch
      %13 = sbr.rel target = $region3
    $region8: #{dwsep_forward.1} parent=1 // loop_exit
      _
    %1540 = vsyncpa [#allocation3], 1
    %s1541 = scalar_lea.sflag [#allocation3], 1
    %1542 = vsyncpa %s1541, 1

</llo_original>
